<compile_context>
chip_gen: v5e
topology: v5e:2x2
jax: 0.10.0
libtpu: 0.0.40
codegen_flags: <defaults>
</compile_context>

<pallas_src>
from functools import partial

import jax
import jax.numpy as jnp
from jax import lax
from jax.experimental import pallas as pl
from jax.experimental.pallas import tpu as pltpu

DIM_IN = 8
DIM_HIDDEN = 32
DIM_REG = 16
LAYER_NUM = 3

NEG_SLOPE = 0.01   # nn.LeakyReLU default
LN_EPS = 1e-5      # nn.LayerNorm default


def _round_up(n, m):
    return ((n + m - 1) // m) * m


def _leaky_relu(x):
    # slope < 1  =>  LeakyReLU(x) == max(x, slope*x): 2 VALU ops instead of 3.
    return jnp.maximum(x, NEG_SLOPE * x)


def _layer_norm_fm(h, gamma, beta):
    """LayerNorm over the feature axis (axis 0) in feature-major layout.

    One-pass statistics (sum and sum-of-squares in a single sweep);
    normalize as (h - mean) * inv, then * gamma, + beta.
    """
    n = h.shape[0]
    mean = jnp.sum(h, axis=0, keepdims=True) * (1.0 / n)
    meansq = jnp.sum(h * h, axis=0, keepdims=True) * (1.0 / n)
    var = jnp.maximum(meansq - mean * mean, 0.0)
    inv = lax.rsqrt(var + LN_EPS)
    return (h - mean) * inv * gamma + beta


def _sigmoid_stable(x):
    """Numerically stable sigmoid; single reciprocal reused for both branches.

    (pl.reciprocal(..., approx=True) would push this to the idle EUP slot; kept
    exact here because the logits block is only (1, tile_m) and we validate
    against an f32 reference at tight tolerance.)
    """
    e = jnp.exp(-jnp.abs(x))
    d = pl.reciprocal(1.0 + e, approx=False)
    return jnp.where(x >= 0, d, e * d)


def baseline_kernel(x_ref,        # (tile_m, dim_in)  batch-major input tile
                    w_emb_ref,    # (H, dim_in)       f32 (kept f32 on purpose)
                    w_skip_ref,   # (L, H, H)         f32 or bf16 (wrapper cast)
                    w_reg_ref,    # (R, H)            f32 or bf16 (wrapper cast)
                    vecs_ref,     # (3 + 3L + 2, H, 1) packed per-feature vectors
                    b_out_ref,    # (1, 1)            scalar output bias in SMEM
                    o_ref,        # (1, tile_m)       lane-dense output tile
                    *, layer_num, dim_reg):
    L = layer_num
    R = dim_reg

    def dot(w, h):
        # Weights are pre-cast in the wrapper (grid-invariant); only the
        # per-step activation cast happens here.  Accumulate in f32.
        return jnp.dot(w, h.astype(w.dtype), preferred_element_type=jnp.float32)

    # Embedding: contract dim_in of W (out, in) against dim_in of x (batch, in)
    # -> feature-major activations (H, tile_m); batch lands on the 128-lane axis
    # with no wrapper-side transpose of x.  ("NT" dot, same dimension numbers as
    # the official flash-attention TPU kernel.)
    x = x_ref[...].astype(jnp.float32)                       # (tile_m, dim_in)
    h = lax.dot_general(w_emb_ref[...], x, (((1,), (1,)), ((), ())),
                        preferred_element_type=jnp.float32)  # (H, tile_m)
    h = h + vecs_ref[0]
    h = _layer_norm_fm(_leaky_relu(h), vecs_ref[1], vecs_ref[2])

    # SkipConnection blocks (dropout p=0 -> identity); layer_num is small and
    # static -> unrolled.
    for l in range(L):
        lin = dot(w_skip_ref[l], h) + vecs_ref[3 + 3 * l + 0]
        h = _layer_norm_fm(h + _leaky_relu(lin),
                           vecs_ref[3 + 3 * l + 1],
                           vecs_ref[3 + 3 * l + 2])

    # regression head -> LeakyReLU
    b_reg = vecs_ref[3 + 3 * L][:R]                          # (R, 1)
    w_out = vecs_ref[3 + 3 * L + 1][:R]                      # (R, 1)
    r = _leaky_relu(dot(w_reg_ref[...], h) + b_reg)          # (R, tile_m)

    # Output linear has a single output unit: VPU multiply + sublane reduce
    # instead of burning an MXU pass for one useful column.
    logit = jnp.sum(r * w_out, axis=0, keepdims=True) + b_out_ref[0, 0]
    o_ref[...] = _sigmoid_stable(logit).astype(o_ref.dtype)  # (1, tile_m)


def deep_learning_baseline(x, params, *, tile_m=4096, matmul_dtype=None,
                           min_grid_steps=1, core_parallel=False):
    """x: (B, dim_in).  Returns (B, 1), matching the PyTorch module.

    tile_m        : lane tile (batch rows per grid step); rounded to 128.
    matmul_dtype  : e.g. jnp.bfloat16 to feed the MXU bf16 operands on v6e/v7x
                    (weights cast once here; the tiny embedding matmul stays f32).
    min_grid_steps: set to 2 on v7x so both TensorCores get work.
    core_parallel : set True on v7x to use CORE_PARALLEL grid semantics.
    """
    B, dim_in = x.shape
    H = params["w_emb"].shape[0]
    L = params["w_skip"].shape[0]
    R = params["w_reg"].shape[0]

    # ---- lane-tile sizing -------------------------------------------------
    tile_m = max(128, (int(tile_m) // 128) * 128)
    tile_m = min(tile_m, _round_up(B, 128))
    if min_grid_steps > 1 and B > 512:
        # v7x only: make sure the grid splits across both TensorCores, but never
        # shrink the tile below 512 lanes.
        tile_m = min(tile_m, max(512, _round_up(pl.cdiv(B, min_grid_steps), 128)))
    grid_n = pl.cdiv(B, tile_m)
    tile_m = _round_up(pl.cdiv(B, grid_n), 128)   # rebalance -> minimal padding
    B_pad = grid_n * tile_m

    # Ragged batch: pad rows only when needed (no transpose, no zeros rewrite).
    if B_pad != B:
        x = jnp.pad(x, ((0, B_pad - B), (0, 0)))

    # ---- pack the small per-feature vectors into one (NV, H, 1) array ------
    def col(v):
        v = jnp.asarray(v, jnp.float32).reshape(-1)
        if v.shape[0] < H:
            v = jnp.pad(v, (0, H - v.shape[0]))
        return v.reshape(H, 1)

    vec_list = [col(params["b_emb"]), col(params["g_emb"]), col(params["be_emb"])]
    for l in range(L):
        vec_list += [col(params["b_skip"][l]), col(params["g_skip"][l]),
                     col(params["be_skip"][l])]
    vec_list += [col(params["b_reg"]), col(params["w_out"])]
    vecs = jnp.stack(vec_list)                                # (3+3L+2, H, 1)

    # MXU operand dtype: cast grid-invariant weights once here (not per step).
    wd = jnp.float32 if matmul_dtype is None else matmul_dtype
    w_emb = jnp.asarray(params["w_emb"], jnp.float32)         # keep f32 (K=8)
    w_skip = jnp.asarray(params["w_skip"]).astype(wd)
    w_reg = jnp.asarray(params["w_reg"]).astype(wd)
    b_out = jnp.asarray(params["b_out"], jnp.float32).reshape(1, 1)

    def full_vmem(a):
        nd = a.ndim
        return pl.BlockSpec(a.shape, lambda i, _nd=nd: (0,) * _nd)

    dim_sem = (pltpu.CORE_PARALLEL,) if core_parallel else ("parallel",)

    out = pl.pallas_call(
        partial(baseline_kernel, layer_num=L, dim_reg=R),
        out_shape=jax.ShapeDtypeStruct((1, B_pad), jnp.float32),
        grid=(grid_n,),
        in_specs=[pl.BlockSpec((tile_m, dim_in), lambda i: (i, 0)),
                  full_vmem(w_emb),
                  full_vmem(w_skip),
                  full_vmem(w_reg),
                  full_vmem(vecs),
                  pl.BlockSpec(memory_space=pltpu.MemorySpace.SMEM)],
        out_specs=pl.BlockSpec((1, tile_m), lambda i: (0, i)),
        compiler_params=pltpu.CompilerParams(dimension_semantics=dim_sem),
    )(x, w_emb, w_skip, w_reg, vecs, b_out)

    return out[0, :B][:, None]                                # (B, 1)


def init_params(key, dim_in=DIM_IN, dim_hidden=DIM_HIDDEN,
                layer_num=LAYER_NUM, dim_reg=DIM_REG):
    """Parameters in the PyTorch module's natural (out, in) layout."""
    H, R, L = dim_hidden, dim_reg, layer_num
    ks = jax.random.split(key, 12)
    s = 0.1
    return {
        "w_emb": s * jax.random.normal(ks[0], (H, dim_in), jnp.float32),
        "b_emb": s * jax.random.normal(ks[1], (H,), jnp.float32),
        "g_emb": 1.0 + s * jax.random.normal(ks[2], (H,), jnp.float32),
        "be_emb": s * jax.random.normal(ks[3], (H,), jnp.float32),
        "w_skip": s * jax.random.normal(ks[4], (L, H, H), jnp.float32),
        "b_skip": s * jax.random.normal(ks[5], (L, H), jnp.float32),
        "g_skip": 1.0 + s * jax.random.normal(ks[6], (L, H), jnp.float32),
        "be_skip": s * jax.random.normal(ks[7], (L, H), jnp.float32),
        "w_reg": s * jax.random.normal(ks[8], (R, H), jnp.float32),
        "b_reg": s * jax.random.normal(ks[9], (R,), jnp.float32),
        "w_out": s * jax.random.normal(ks[10], (1, R), jnp.float32),
        "b_out": s * jax.random.normal(ks[11], (1,), jnp.float32),
    }


def reference_forward(x, p):
    """Pure-JAX reference matching the PyTorch module (for self-check)."""
    def leaky(v):
        return jnp.where(v > 0, v, NEG_SLOPE * v)

    def ln(h, g, b):
        m = jnp.mean(h, axis=-1, keepdims=True)
        v = jnp.mean((h - m) ** 2, axis=-1, keepdims=True)
        return (h - m) * lax.rsqrt(v + LN_EPS) * g + b

    xf = x.astype(jnp.float32)
    h = ln(leaky(xf @ p["w_emb"].T + p["b_emb"]), p["g_emb"], p["be_emb"])
    for l in range(p["w_skip"].shape[0]):
        lin = leaky(h @ p["w_skip"][l].T + p["b_skip"][l])
        h = ln(h + lin, p["g_skip"][l], p["be_skip"][l])
    r = leaky(h @ p["w_reg"].T + p["b_reg"])
    return jax.nn.sigmoid(r @ p["w_out"].T + p["b_out"])      # (B, 1)


if __name__ == "__main__":
    key = jax.random.PRNGKey(0)
    k_x, k_p = jax.random.split(key)

    params = init_params(k_p)

    # Small but lane-dense: 256 rows -> one 256-lane grid step.
    batch = 256
    x = jax.random.normal(k_x, (batch, DIM_IN), jnp.float32)

    out = jax.block_until_ready(deep_learning_baseline(x, params))
    ref = reference_forward(x, params)
    assert out.shape == (batch, 1)
    assert jnp.allclose(out, ref, atol=1e-4, rtol=1e-4), "mismatch vs reference (f32)"

    # Ragged batch + multi-step grid (exercises padding and the output index map).
    batch2 = 300
    x2 = jax.random.normal(k_x, (batch2, DIM_IN), jnp.float32)
    out2 = jax.block_until_ready(deep_learning_baseline(x2, params, tile_m=128))
    ref2 = reference_forward(x2, params)
    assert out2.shape == (batch2, 1)
    assert jnp.allclose(out2, ref2, atol=1e-4, rtol=1e-4), "mismatch vs reference (ragged)"

    # bf16 MXU-operand path (weights cast once in the wrapper; elementwise f32).
    out_bf16 = jax.block_until_ready(
        deep_learning_baseline(x, params, matmul_dtype=jnp.bfloat16))
    assert out_bf16.shape == (batch, 1)
    assert jnp.allclose(out_bf16, ref, atol=3e-2, rtol=3e-2), "mismatch vs reference (bf16)"

    print("KERNEL_OK")
</pallas_src>

<mosaic_0001>
module attributes {stable_mosaic.version = 11 : i64} {
  func.func @baseline_kernel(%arg0: i32, %arg1: memref<256x8xf32, #tpu.memory_space<vmem>>, %arg2: memref<32x8xf32, #tpu.memory_space<vmem>>, %arg3: memref<3x32x32xf32, #tpu.memory_space<vmem>>, %arg4: memref<16x32xf32, #tpu.memory_space<vmem>>, %arg5: memref<14x32x1xf32, #tpu.memory_space<vmem>>, %arg6: memref<1x1xf32, #tpu.memory_space<smem>>, %arg7: memref<1x256xf32, #tpu.memory_space<vmem>>) attributes {dimension_semantics = [#tpu.dimension_semantics<parallel>], iteration_bounds = array<i64: 1>, scalar_prefetch = 0 : i64, scratch_operands = 0 : i64, tpu.core_type = #tpu.core_type<tc>, window_params = [{transform_indices = @transform_0, window_bounds = array<i64: 256, 8>}, {pipeline_mode = #tpu.pipeline_mode<synchronous>, transform_indices = @transform_1, window_bounds = array<i64: 32, 8>}, {pipeline_mode = #tpu.pipeline_mode<synchronous>, transform_indices = @transform_2, window_bounds = array<i64: 3, 32, 32>}, {pipeline_mode = #tpu.pipeline_mode<synchronous>, transform_indices = @transform_3, window_bounds = array<i64: 16, 32>}, {pipeline_mode = #tpu.pipeline_mode<synchronous>, transform_indices = @transform_4, window_bounds = array<i64: 14, 32, 1>}, {transform_indices = @transform_5, window_bounds = array<i64: 1, 1>}, {transform_indices = @transform_6, window_bounds = array<i64: 1, 256>}]} {
    %c0 = arith.constant 0 : index
    %c0_0 = arith.constant 0 : index
    %0 = vector.load %arg1[%c0, %c0_0] : memref<256x8xf32, #tpu.memory_space<vmem>>, vector<256x8xf32>
    %c0_1 = arith.constant 0 : index
    %c0_2 = arith.constant 0 : index
    %1 = vector.load %arg2[%c0_1, %c0_2] : memref<32x8xf32, #tpu.memory_space<vmem>>, vector<32x8xf32>
    %cst = arith.constant dense<0.000000e+00> : vector<32x256xf32>
    %2 = tpu.matmul %1, %0, %cst {dimension_numbers = #tpu.dot_dimension_numbers<[1], [1], [0], [0], [0, 0, 1, 0], [], []>} : vector<32x8xf32>, vector<256x8xf32>, vector<32x256xf32> -> vector<32x256xf32>
    %c0_3 = arith.constant 0 : index
    %c0_4 = arith.constant 0 : index
    %c0_5 = arith.constant 0 : index
    %3 = vector.load %arg5[%c0_3, %c0_4, %c0_5] : memref<14x32x1xf32, #tpu.memory_space<vmem>>, vector<1x32x1xf32>
    %4 = vector.shape_cast %3 : vector<1x32x1xf32> to vector<32x1xf32>
    %5 = vector.broadcast %4 : vector<32x1xf32> to vector<32x256xf32>
    %6 = arith.addf %2, %5 : vector<32x256xf32>
    %cst_6 = arith.constant 0.00999999977 : f32
    %7 = vector.broadcast %cst_6 : f32 to vector<32x256xf32>
    %8 = arith.mulf %7, %6 : vector<32x256xf32>
    %9 = arith.maximumf %6, %8 : vector<32x256xf32>
    %c1 = arith.constant 1 : index
    %c0_7 = arith.constant 0 : index
    %c0_8 = arith.constant 0 : index
    %10 = vector.load %arg5[%c1, %c0_7, %c0_8] : memref<14x32x1xf32, #tpu.memory_space<vmem>>, vector<1x32x1xf32>
    %11 = vector.shape_cast %10 : vector<1x32x1xf32> to vector<32x1xf32>
    %c2 = arith.constant 2 : index
    %c0_9 = arith.constant 0 : index
    %c0_10 = arith.constant 0 : index
    %12 = vector.load %arg5[%c2, %c0_9, %c0_10] : memref<14x32x1xf32, #tpu.memory_space<vmem>>, vector<1x32x1xf32>
    %13 = vector.shape_cast %12 : vector<1x32x1xf32> to vector<32x1xf32>
    %cst_11 = arith.constant dense<0.000000e+00> : vector<256xf32>
    %14 = vector.multi_reduction <add>, %9, %cst_11 [0] : vector<32x256xf32> to vector<256xf32>
    %15 = vector.shape_cast %14 : vector<256xf32> to vector<1x256xf32>
    %cst_12 = arith.constant 3.125000e-02 : f32
    %16 = vector.broadcast %cst_12 : f32 to vector<1x256xf32>
    %17 = arith.mulf %15, %16 : vector<1x256xf32>
    %18 = arith.mulf %9, %9 : vector<32x256xf32>
    %cst_13 = arith.constant dense<0.000000e+00> : vector<256xf32>
    %19 = vector.multi_reduction <add>, %18, %cst_13 [0] : vector<32x256xf32> to vector<256xf32>
    %20 = vector.shape_cast %19 : vector<256xf32> to vector<1x256xf32>
    %cst_14 = arith.constant 3.125000e-02 : f32
    %21 = vector.broadcast %cst_14 : f32 to vector<1x256xf32>
    %22 = arith.mulf %20, %21 : vector<1x256xf32>
    %23 = arith.mulf %17, %17 : vector<1x256xf32>
    %24 = arith.subf %22, %23 : vector<1x256xf32>
    %cst_15 = arith.constant 0.000000e+00 : f32
    %25 = vector.broadcast %cst_15 : f32 to vector<1x256xf32>
    %26 = arith.maximumf %24, %25 : vector<1x256xf32>
    %cst_16 = arith.constant 9.99999974E-6 : f32
    %27 = vector.broadcast %cst_16 : f32 to vector<1x256xf32>
    %28 = arith.addf %26, %27 : vector<1x256xf32>
    %29 = math.rsqrt %28 : vector<1x256xf32>
    %30 = vector.broadcast %17 : vector<1x256xf32> to vector<32x256xf32>
    %31 = arith.subf %9, %30 : vector<32x256xf32>
    %32 = vector.broadcast %29 : vector<1x256xf32> to vector<32x256xf32>
    %33 = arith.mulf %31, %32 : vector<32x256xf32>
    %34 = vector.broadcast %11 : vector<32x1xf32> to vector<32x256xf32>
    %35 = arith.mulf %33, %34 : vector<32x256xf32>
    %36 = vector.broadcast %13 : vector<32x1xf32> to vector<32x256xf32>
    %37 = arith.addf %35, %36 : vector<32x256xf32>
    %c0_17 = arith.constant 0 : index
    %c0_18 = arith.constant 0 : index
    %c0_19 = arith.constant 0 : index
    %38 = vector.load %arg3[%c0_17, %c0_18, %c0_19] : memref<3x32x32xf32, #tpu.memory_space<vmem>>, vector<1x32x32xf32>
    %39 = vector.shape_cast %38 : vector<1x32x32xf32> to vector<32x32xf32>
    %cst_20 = arith.constant dense<0.000000e+00> : vector<32x256xf32>
    %40 = tpu.matmul %39, %37, %cst_20 {dimension_numbers = #tpu.dot_dimension_numbers<[1], [0], [0], [1], [0, 0, 1, 1], [], []>} : vector<32x32xf32>, vector<32x256xf32>, vector<32x256xf32> -> vector<32x256xf32>
    %c3 = arith.constant 3 : index
    %c0_21 = arith.constant 0 : index
    %c0_22 = arith.constant 0 : index
    %41 = vector.load %arg5[%c3, %c0_21, %c0_22] : memref<14x32x1xf32, #tpu.memory_space<vmem>>, vector<1x32x1xf32>
    %42 = vector.shape_cast %41 : vector<1x32x1xf32> to vector<32x1xf32>
    %43 = vector.broadcast %42 : vector<32x1xf32> to vector<32x256xf32>
    %44 = arith.addf %40, %43 : vector<32x256xf32>
    %cst_23 = arith.constant 0.00999999977 : f32
    %45 = vector.broadcast %cst_23 : f32 to vector<32x256xf32>
    %46 = arith.mulf %45, %44 : vector<32x256xf32>
    %47 = arith.maximumf %44, %46 : vector<32x256xf32>
    %48 = arith.addf %37, %47 : vector<32x256xf32>
    %c4 = arith.constant 4 : index
    %c0_24 = arith.constant 0 : index
    %c0_25 = arith.constant 0 : index
    %49 = vector.load %arg5[%c4, %c0_24, %c0_25] : memref<14x32x1xf32, #tpu.memory_space<vmem>>, vector<1x32x1xf32>
    %50 = vector.shape_cast %49 : vector<1x32x1xf32> to vector<32x1xf32>
    %c5 = arith.constant 5 : index
    %c0_26 = arith.constant 0 : index
    %c0_27 = arith.constant 0 : index
    %51 = vector.load %arg5[%c5, %c0_26, %c0_27] : memref<14x32x1xf32, #tpu.memory_space<vmem>>, vector<1x32x1xf32>
    %52 = vector.shape_cast %51 : vector<1x32x1xf32> to vector<32x1xf32>
    %cst_28 = arith.constant dense<0.000000e+00> : vector<256xf32>
    %53 = vector.multi_reduction <add>, %48, %cst_28 [0] : vector<32x256xf32> to vector<256xf32>
    %54 = vector.shape_cast %53 : vector<256xf32> to vector<1x256xf32>
    %cst_29 = arith.constant 3.125000e-02 : f32
    %55 = vector.broadcast %cst_29 : f32 to vector<1x256xf32>
    %56 = arith.mulf %54, %55 : vector<1x256xf32>
    %57 = arith.mulf %48, %48 : vector<32x256xf32>
    %cst_30 = arith.constant dense<0.000000e+00> : vector<256xf32>
    %58 = vector.multi_reduction <add>, %57, %cst_30 [0] : vector<32x256xf32> to vector<256xf32>
    %59 = vector.shape_cast %58 : vector<256xf32> to vector<1x256xf32>
    %cst_31 = arith.constant 3.125000e-02 : f32
    %60 = vector.broadcast %cst_31 : f32 to vector<1x256xf32>
    %61 = arith.mulf %59, %60 : vector<1x256xf32>
    %62 = arith.mulf %56, %56 : vector<1x256xf32>
    %63 = arith.subf %61, %62 : vector<1x256xf32>
    %cst_32 = arith.constant 0.000000e+00 : f32
    %64 = vector.broadcast %cst_32 : f32 to vector<1x256xf32>
    %65 = arith.maximumf %63, %64 : vector<1x256xf32>
    %cst_33 = arith.constant 9.99999974E-6 : f32
    %66 = vector.broadcast %cst_33 : f32 to vector<1x256xf32>
    %67 = arith.addf %65, %66 : vector<1x256xf32>
    %68 = math.rsqrt %67 : vector<1x256xf32>
    %69 = vector.broadcast %56 : vector<1x256xf32> to vector<32x256xf32>
    %70 = arith.subf %48, %69 : vector<32x256xf32>
    %71 = vector.broadcast %68 : vector<1x256xf32> to vector<32x256xf32>
    %72 = arith.mulf %70, %71 : vector<32x256xf32>
    %73 = vector.broadcast %50 : vector<32x1xf32> to vector<32x256xf32>
    %74 = arith.mulf %72, %73 : vector<32x256xf32>
    %75 = vector.broadcast %52 : vector<32x1xf32> to vector<32x256xf32>
    %76 = arith.addf %74, %75 : vector<32x256xf32>
    %c1_34 = arith.constant 1 : index
    %c0_35 = arith.constant 0 : index
    %c0_36 = arith.constant 0 : index
    %77 = vector.load %arg3[%c1_34, %c0_35, %c0_36] : memref<3x32x32xf32, #tpu.memory_space<vmem>>, vector<1x32x32xf32>
    %78 = vector.shape_cast %77 : vector<1x32x32xf32> to vector<32x32xf32>
    %cst_37 = arith.constant dense<0.000000e+00> : vector<32x256xf32>
    %79 = tpu.matmul %78, %76, %cst_37 {dimension_numbers = #tpu.dot_dimension_numbers<[1], [0], [0], [1], [0, 0, 1, 1], [], []>} : vector<32x32xf32>, vector<32x256xf32>, vector<32x256xf32> -> vector<32x256xf32>
    %c6 = arith.constant 6 : index
    %c0_38 = arith.constant 0 : index
    %c0_39 = arith.constant 0 : index
    %80 = vector.load %arg5[%c6, %c0_38, %c0_39] : memref<14x32x1xf32, #tpu.memory_space<vmem>>, vector<1x32x1xf32>
    %81 = vector.shape_cast %80 : vector<1x32x1xf32> to vector<32x1xf32>
    %82 = vector.broadcast %81 : vector<32x1xf32> to vector<32x256xf32>
    %83 = arith.addf %79, %82 : vector<32x256xf32>
    %cst_40 = arith.constant 0.00999999977 : f32
    %84 = vector.broadcast %cst_40 : f32 to vector<32x256xf32>
    %85 = arith.mulf %84, %83 : vector<32x256xf32>
    %86 = arith.maximumf %83, %85 : vector<32x256xf32>
    %87 = arith.addf %76, %86 : vector<32x256xf32>
    %c7 = arith.constant 7 : index
    %c0_41 = arith.constant 0 : index
    %c0_42 = arith.constant 0 : index
    %88 = vector.load %arg5[%c7, %c0_41, %c0_42] : memref<14x32x1xf32, #tpu.memory_space<vmem>>, vector<1x32x1xf32>
    %89 = vector.shape_cast %88 : vector<1x32x1xf32> to vector<32x1xf32>
    %c8 = arith.constant 8 : index
    %c0_43 = arith.constant 0 : index
    %c0_44 = arith.constant 0 : index
    %90 = vector.load %arg5[%c8, %c0_43, %c0_44] : memref<14x32x1xf32, #tpu.memory_space<vmem>>, vector<1x32x1xf32>
    %91 = vector.shape_cast %90 : vector<1x32x1xf32> to vector<32x1xf32>
    %cst_45 = arith.constant dense<0.000000e+00> : vector<256xf32>
    %92 = vector.multi_reduction <add>, %87, %cst_45 [0] : vector<32x256xf32> to vector<256xf32>
    %93 = vector.shape_cast %92 : vector<256xf32> to vector<1x256xf32>
    %cst_46 = arith.constant 3.125000e-02 : f32
    %94 = vector.broadcast %cst_46 : f32 to vector<1x256xf32>
    %95 = arith.mulf %93, %94 : vector<1x256xf32>
    %96 = arith.mulf %87, %87 : vector<32x256xf32>
    %cst_47 = arith.constant dense<0.000000e+00> : vector<256xf32>
    %97 = vector.multi_reduction <add>, %96, %cst_47 [0] : vector<32x256xf32> to vector<256xf32>
    %98 = vector.shape_cast %97 : vector<256xf32> to vector<1x256xf32>
    %cst_48 = arith.constant 3.125000e-02 : f32
    %99 = vector.broadcast %cst_48 : f32 to vector<1x256xf32>
    %100 = arith.mulf %98, %99 : vector<1x256xf32>
    %101 = arith.mulf %95, %95 : vector<1x256xf32>
    %102 = arith.subf %100, %101 : vector<1x256xf32>
    %cst_49 = arith.constant 0.000000e+00 : f32
    %103 = vector.broadcast %cst_49 : f32 to vector<1x256xf32>
    %104 = arith.maximumf %102, %103 : vector<1x256xf32>
    %cst_50 = arith.constant 9.99999974E-6 : f32
    %105 = vector.broadcast %cst_50 : f32 to vector<1x256xf32>
    %106 = arith.addf %104, %105 : vector<1x256xf32>
    %107 = math.rsqrt %106 : vector<1x256xf32>
    %108 = vector.broadcast %95 : vector<1x256xf32> to vector<32x256xf32>
    %109 = arith.subf %87, %108 : vector<32x256xf32>
    %110 = vector.broadcast %107 : vector<1x256xf32> to vector<32x256xf32>
    %111 = arith.mulf %109, %110 : vector<32x256xf32>
    %112 = vector.broadcast %89 : vector<32x1xf32> to vector<32x256xf32>
    %113 = arith.mulf %111, %112 : vector<32x256xf32>
    %114 = vector.broadcast %91 : vector<32x1xf32> to vector<32x256xf32>
    %115 = arith.addf %113, %114 : vector<32x256xf32>
    %c2_51 = arith.constant 2 : index
    %c0_52 = arith.constant 0 : index
    %c0_53 = arith.constant 0 : index
    %116 = vector.load %arg3[%c2_51, %c0_52, %c0_53] : memref<3x32x32xf32, #tpu.memory_space<vmem>>, vector<1x32x32xf32>
    %117 = vector.shape_cast %116 : vector<1x32x32xf32> to vector<32x32xf32>
    %cst_54 = arith.constant dense<0.000000e+00> : vector<32x256xf32>
    %118 = tpu.matmul %117, %115, %cst_54 {dimension_numbers = #tpu.dot_dimension_numbers<[1], [0], [0], [1], [0, 0, 1, 1], [], []>} : vector<32x32xf32>, vector<32x256xf32>, vector<32x256xf32> -> vector<32x256xf32>
    %c9 = arith.constant 9 : index
    %c0_55 = arith.constant 0 : index
    %c0_56 = arith.constant 0 : index
    %119 = vector.load %arg5[%c9, %c0_55, %c0_56] : memref<14x32x1xf32, #tpu.memory_space<vmem>>, vector<1x32x1xf32>
    %120 = vector.shape_cast %119 : vector<1x32x1xf32> to vector<32x1xf32>
    %121 = vector.broadcast %120 : vector<32x1xf32> to vector<32x256xf32>
    %122 = arith.addf %118, %121 : vector<32x256xf32>
    %cst_57 = arith.constant 0.00999999977 : f32
    %123 = vector.broadcast %cst_57 : f32 to vector<32x256xf32>
    %124 = arith.mulf %123, %122 : vector<32x256xf32>
    %125 = arith.maximumf %122, %124 : vector<32x256xf32>
    %126 = arith.addf %115, %125 : vector<32x256xf32>
    %c10 = arith.constant 10 : index
    %c0_58 = arith.constant 0 : index
    %c0_59 = arith.constant 0 : index
    %127 = vector.load %arg5[%c10, %c0_58, %c0_59] : memref<14x32x1xf32, #tpu.memory_space<vmem>>, vector<1x32x1xf32>
    %128 = vector.shape_cast %127 : vector<1x32x1xf32> to vector<32x1xf32>
    %c11 = arith.constant 11 : index
    %c0_60 = arith.constant 0 : index
    %c0_61 = arith.constant 0 : index
    %129 = vector.load %arg5[%c11, %c0_60, %c0_61] : memref<14x32x1xf32, #tpu.memory_space<vmem>>, vector<1x32x1xf32>
    %130 = vector.shape_cast %129 : vector<1x32x1xf32> to vector<32x1xf32>
    %cst_62 = arith.constant dense<0.000000e+00> : vector<256xf32>
    %131 = vector.multi_reduction <add>, %126, %cst_62 [0] : vector<32x256xf32> to vector<256xf32>
    %132 = vector.shape_cast %131 : vector<256xf32> to vector<1x256xf32>
    %cst_63 = arith.constant 3.125000e-02 : f32
    %133 = vector.broadcast %cst_63 : f32 to vector<1x256xf32>
    %134 = arith.mulf %132, %133 : vector<1x256xf32>
    %135 = arith.mulf %126, %126 : vector<32x256xf32>
    %cst_64 = arith.constant dense<0.000000e+00> : vector<256xf32>
    %136 = vector.multi_reduction <add>, %135, %cst_64 [0] : vector<32x256xf32> to vector<256xf32>
    %137 = vector.shape_cast %136 : vector<256xf32> to vector<1x256xf32>
    %cst_65 = arith.constant 3.125000e-02 : f32
    %138 = vector.broadcast %cst_65 : f32 to vector<1x256xf32>
    %139 = arith.mulf %137, %138 : vector<1x256xf32>
    %140 = arith.mulf %134, %134 : vector<1x256xf32>
    %141 = arith.subf %139, %140 : vector<1x256xf32>
    %cst_66 = arith.constant 0.000000e+00 : f32
    %142 = vector.broadcast %cst_66 : f32 to vector<1x256xf32>
    %143 = arith.maximumf %141, %142 : vector<1x256xf32>
    %cst_67 = arith.constant 9.99999974E-6 : f32
    %144 = vector.broadcast %cst_67 : f32 to vector<1x256xf32>
    %145 = arith.addf %143, %144 : vector<1x256xf32>
    %146 = math.rsqrt %145 : vector<1x256xf32>
    %147 = vector.broadcast %134 : vector<1x256xf32> to vector<32x256xf32>
    %148 = arith.subf %126, %147 : vector<32x256xf32>
    %149 = vector.broadcast %146 : vector<1x256xf32> to vector<32x256xf32>
    %150 = arith.mulf %148, %149 : vector<32x256xf32>
    %151 = vector.broadcast %128 : vector<32x1xf32> to vector<32x256xf32>
    %152 = arith.mulf %150, %151 : vector<32x256xf32>
    %153 = vector.broadcast %130 : vector<32x1xf32> to vector<32x256xf32>
    %154 = arith.addf %152, %153 : vector<32x256xf32>
    %c12 = arith.constant 12 : index
    %c0_68 = arith.constant 0 : index
    %c0_69 = arith.constant 0 : index
    %155 = vector.load %arg5[%c12, %c0_68, %c0_69] : memref<14x32x1xf32, #tpu.memory_space<vmem>>, vector<1x32x1xf32>
    %156 = vector.shape_cast %155 : vector<1x32x1xf32> to vector<32x1xf32>
    %157 = vector.extract_strided_slice %156 {offsets = [0, 0], sizes = [16, 1], strides = [1, 1]} : vector<32x1xf32> to vector<16x1xf32>
    %c13 = arith.constant 13 : index
    %c0_70 = arith.constant 0 : index
    %c0_71 = arith.constant 0 : index
    %158 = vector.load %arg5[%c13, %c0_70, %c0_71] : memref<14x32x1xf32, #tpu.memory_space<vmem>>, vector<1x32x1xf32>
    %159 = vector.shape_cast %158 : vector<1x32x1xf32> to vector<32x1xf32>
    %160 = vector.extract_strided_slice %159 {offsets = [0, 0], sizes = [16, 1], strides = [1, 1]} : vector<32x1xf32> to vector<16x1xf32>
    %c0_72 = arith.constant 0 : index
    %c0_73 = arith.constant 0 : index
    %161 = vector.load %arg4[%c0_72, %c0_73] : memref<16x32xf32, #tpu.memory_space<vmem>>, vector<16x32xf32>
    %cst_74 = arith.constant dense<0.000000e+00> : vector<16x256xf32>
    %162 = tpu.matmul %161, %154, %cst_74 {dimension_numbers = #tpu.dot_dimension_numbers<[1], [0], [0], [1], [0, 0, 1, 1], [], []>} : vector<16x32xf32>, vector<32x256xf32>, vector<16x256xf32> -> vector<16x256xf32>
    %163 = vector.broadcast %157 : vector<16x1xf32> to vector<16x256xf32>
    %164 = arith.addf %162, %163 : vector<16x256xf32>
    %cst_75 = arith.constant 0.00999999977 : f32
    %165 = vector.broadcast %cst_75 : f32 to vector<16x256xf32>
    %166 = arith.mulf %165, %164 : vector<16x256xf32>
    %167 = arith.maximumf %164, %166 : vector<16x256xf32>
    %168 = vector.broadcast %160 : vector<16x1xf32> to vector<16x256xf32>
    %169 = arith.mulf %167, %168 : vector<16x256xf32>
    %cst_76 = arith.constant dense<0.000000e+00> : vector<256xf32>
    %170 = vector.multi_reduction <add>, %169, %cst_76 [0] : vector<16x256xf32> to vector<256xf32>
    %171 = vector.shape_cast %170 : vector<256xf32> to vector<1x256xf32>
    %c0_77 = arith.constant 0 : index
    %c0_78 = arith.constant 0 : index
    %172 = memref.load %arg6[%c0_77, %c0_78] : memref<1x1xf32, #tpu.memory_space<smem>>
    %173 = vector.broadcast %172 : f32 to vector<1x256xf32>
    %174 = arith.addf %171, %173 : vector<1x256xf32>
    %175 = math.absf %174 : vector<1x256xf32>
    %cst_79 = arith.constant 0.000000e+00 : f32
    %176 = vector.broadcast %cst_79 : f32 to vector<1x256xf32>
    %177 = arith.subf %176, %175 : vector<1x256xf32>
    %178 = math.exp %177 : vector<1x256xf32>
    %cst_80 = arith.constant 1.000000e+00 : f32
    %179 = vector.broadcast %cst_80 : f32 to vector<1x256xf32>
    %180 = arith.addf %179, %178 : vector<1x256xf32>
    %181 = tpu.reciprocal %180 : vector<1x256xf32> -> vector<1x256xf32>
    %cst_81 = arith.constant 0.000000e+00 : f32
    %182 = vector.broadcast %cst_81 : f32 to vector<1x256xf32>
    %183 = arith.cmpf oge, %174, %182 : vector<1x256xf32>
    %184 = arith.mulf %178, %181 : vector<1x256xf32>
    %185 = arith.select %183, %181, %184 : vector<1x256xi1>, vector<1x256xf32>
    %c0_82 = arith.constant 0 : index
    %c0_83 = arith.constant 0 : index
    %186 = vector.load %arg7[%c0_82, %c0_83] : memref<1x256xf32, #tpu.memory_space<vmem>>, vector<1x256xf32>
    tpu.vector_store %arg7[%c0_82, %c0_83], %185 {strides = array<i32>} : memref<1x256xf32, #tpu.memory_space<vmem>>, vector<1x256xf32>,
    return
  }
  func.func @transform_0(%arg0: i32) -> (i32, i32) {
    %c0_i32 = arith.constant 0 : i32
    %c0_i32_0 = arith.constant 0 : i32
    return %arg0, %c0_i32 : i32, i32
  }
  func.func @transform_1(%arg0: i32) -> (i32, i32) {
    %c0_i32 = arith.constant 0 : i32
    %c0_i32_0 = arith.constant 0 : i32
    %c0_i32_1 = arith.constant 0 : i32
    return %c0_i32, %c0_i32_0 : i32, i32
  }
  func.func @transform_2(%arg0: i32) -> (i32, i32, i32) {
    %c0_i32 = arith.constant 0 : i32
    %c0_i32_0 = arith.constant 0 : i32
    %c0_i32_1 = arith.constant 0 : i32
    %c0_i32_2 = arith.constant 0 : i32
    return %c0_i32, %c0_i32_0, %c0_i32_1 : i32, i32, i32
  }
  func.func @transform_3(%arg0: i32) -> (i32, i32) {
    %c0_i32 = arith.constant 0 : i32
    %c0_i32_0 = arith.constant 0 : i32
    %c0_i32_1 = arith.constant 0 : i32
    return %c0_i32, %c0_i32_0 : i32, i32
  }
  func.func @transform_4(%arg0: i32) -> (i32, i32, i32) {
    %c0_i32 = arith.constant 0 : i32
    %c0_i32_0 = arith.constant 0 : i32
    %c0_i32_1 = arith.constant 0 : i32
    %c0_i32_2 = arith.constant 0 : i32
    return %c0_i32, %c0_i32_0, %c0_i32_1 : i32, i32, i32
  }
  func.func @transform_5(%arg0: i32) -> (i32, i32) {
    %c0_i32 = arith.constant 0 : i32
    %c0_i32_0 = arith.constant 0 : i32
    %c0_i32_1 = arith.constant 0 : i32
    return %c0_i32, %c0_i32_0 : i32, i32
  }
  func.func @transform_6(%arg0: i32) -> (i32, i32) {
    %c0_i32 = arith.constant 0 : i32
    %c0_i32_0 = arith.constant 0 : i32
    return %c0_i32, %arg0 : i32, i32
  }
}

</mosaic_0001>

<llo_original>
// kernel: tpu_custom_call.1
$region0: #{tpu_custom_call.1}
  #allocation0 [shape = 'u32[]', space=smem, size = 0x4, offset = 0x4, fixed_abs, tag = 'smem constant byte address 0x4 - core index']
  #allocation1 [shape = 'u32[72,128]{1,0:T(1,128)}', space=vmem, size = 0x9000, scoped, tag = 'internal scratch']
  #allocation2 [shape = 'f32[1,1]{1,0:T(1,128)S(6)}', space=smem, size = 0x200, scoped, tag = 'scoped memory for tpu_custom_call.1']
  %s0 = inlined_call_operand.vmem [shape: f32[256,8], index: 0, kind: input, shape index: {}]
  %s1 = inlined_call_operand.vmem [shape: f32[32,8], index: 1, kind: input, shape index: {}]
  %s2 = inlined_call_operand.vmem [shape: f32[3,32,32], index: 2, kind: input, shape index: {}]
  %s3 = inlined_call_operand.vmem [shape: f32[16,32], index: 3, kind: input, shape index: {}]
  %s4 = inlined_call_operand.vmem [shape: f32[14,32,1], index: 4, kind: input, shape index: {}]
  %s5 = inlined_call_operand.<no memory space> [shape: f32[1,1], index: 5, kind: input, shape index: {}]
  %s6 = inlined_call_operand.hbm [shape: f32[1,256], index: 6, kind: output, shape index: {}]
  %s7 = sld [smem:[#allocation0]]
  $region34: #{tpu_custom_call.1} parent=0
    _
  %s9 = ssub.s32 1, %s7
  %s10 = scalar_select 0, %s9, %s7
  %11 = sst [smem:[#allocation2]] %s5
  $region1: #{tpu_custom_call.1} parent=0
    #allocation3 [shape = 'u8[1024]{0}', space=vmem, size = 0x400, scoped, tag = 'output window, operand 0, single buffered']
    #allocation4 [shape = 's32[1]{0}', space=sflag, size = 0x4, scoped, tag = 'scoped memory for tpu_custom_call.1']
    %12 = vsyncpa [#allocation4], 0
    // Predicated region
    $region2: #{tpu_custom_call.1} parent=1 // pred_check
      _
    $region3: #{tpu_custom_call.1} parent=1 // pred_check_branch
      %14 = sbr.rel (0) target = $region5
    $region4: #{tpu_custom_call.1} parent=1 // pred_region
      _
    $region5: #{tpu_custom_call.1} parent=1 // pred_fallthru
      _
    // Predicated region
    $region6: #{tpu_custom_call.1} parent=1 // pred_check
      _
    $region7: #{tpu_custom_call.1} parent=1 // pred_check_branch
      %16 = sbr.rel (0) target = $region9
    $region8: #{tpu_custom_call.1} parent=1 // pred_region
      _
    $region9: #{tpu_custom_call.1} parent=1 // pred_fallthru
      _
    // Predicated region
    $region10: #{tpu_custom_call.1} parent=1 // pred_check
      _
    $region11: #{tpu_custom_call.1} parent=1 // pred_check_branch
      %18 = sbr.rel (0) target = $region13
    $region12: #{tpu_custom_call.1} parent=1 // pred_region
      _
    $region13: #{tpu_custom_call.1} parent=1 // pred_fallthru
      _
    // Predicated region
    $region14: #{tpu_custom_call.1} parent=1 // pred_check
      _
    $region15: #{tpu_custom_call.1} parent=1 // pred_check_branch
      %20 = sbr.rel (0) target = $region17
    $region16: #{tpu_custom_call.1} parent=1 // pred_region
      _
    $region17: #{tpu_custom_call.1} parent=1 // pred_fallthru
      _
    // Predicated region
    $region18: #{tpu_custom_call.1} parent=1 // pred_check
      _
    $region19: #{tpu_custom_call.1} parent=1 // pred_check_branch
      %22 = sbr.rel (0) target = $region21
    $region20: #{tpu_custom_call.1} parent=1 // pred_region
      _
    $region21: #{tpu_custom_call.1} parent=1 // pred_fallthru
      _
    // Predicated region
    $region22: #{tpu_custom_call.1} parent=1 // pred_check
      _
    $region23: #{tpu_custom_call.1} parent=1 // pred_check_branch
      %24 = sbr.rel (0) target = $region25
    $region24: #{tpu_custom_call.1} parent=1 // pred_region
      _
    $region25: #{tpu_custom_call.1} parent=1 // pred_fallthru
      _
    %v25 = vld [vmem:[%s0] sm:$0xff]
    %v26 = vld [vmem:[%s0 + $0x8] sm:$0xff]
    %v27 = vld [vmem:[%s0 + $0x10] sm:$0xff]
    %v28 = vld [vmem:[%s0 + $0x18] sm:$0xff]
    %v29 = vld [vmem:[%s0 + $0x20] sm:$0xff]
    %v30 = vld [vmem:[%s0 + $0x28] sm:$0xff]
    %v31 = vld [vmem:[%s0 + $0x30] sm:$0xff]
    %v32 = vld [vmem:[%s0 + $0x38] sm:$0xff]
    %v33 = vld [vmem:[%s0 + $0x40] sm:$0xff]
    %v34 = vld [vmem:[%s0 + $0x48] sm:$0xff]
    %v35 = vld [vmem:[%s0 + $0x50] sm:$0xff]
    %v36 = vld [vmem:[%s0 + $0x58] sm:$0xff]
    %v37 = vld [vmem:[%s0 + $0x60] sm:$0xff]
    %v38 = vld [vmem:[%s0 + $0x68] sm:$0xff]
    %v39 = vld [vmem:[%s0 + $0x70] sm:$0xff]
    %v40 = vld [vmem:[%s0 + $0x78] sm:$0xff]
    %v41 = vld [vmem:[%s0 + $0x80] sm:$0xff]
    %v42 = vld [vmem:[%s0 + $0x88] sm:$0xff]
    %v43 = vld [vmem:[%s0 + $0x90] sm:$0xff]
    %v44 = vld [vmem:[%s0 + $0x98] sm:$0xff]
    %v45 = vld [vmem:[%s0 + $0xa0] sm:$0xff]
    %v46 = vld [vmem:[%s0 + $0xa8] sm:$0xff]
    %v47 = vld [vmem:[%s0 + $0xb0] sm:$0xff]
    %v48 = vld [vmem:[%s0 + $0xb8] sm:$0xff]
    %v49 = vld [vmem:[%s0 + $0xc0] sm:$0xff]
    %v50 = vld [vmem:[%s0 + $0xc8] sm:$0xff]
    %v51 = vld [vmem:[%s0 + $0xd0] sm:$0xff]
    %v52 = vld [vmem:[%s0 + $0xd8] sm:$0xff]
    %v53 = vld [vmem:[%s0 + $0xe0] sm:$0xff]
    %v54 = vld [vmem:[%s0 + $0xe8] sm:$0xff]
    %v55 = vld [vmem:[%s0 + $0xf0] sm:$0xff]
    %v56 = vld [vmem:[%s0 + $0xf8] sm:$0xff]
    %v57 = vld [vmem:[%s1] sm:$0xff]
    %v58 = vld [vmem:[%s1 + $0x8] sm:$0xff]
    %v59 = vld [vmem:[%s1 + $0x10] sm:$0xff]
    %v60 = vld [vmem:[%s1 + $0x18] sm:$0xff]
    %v61 = vld [vmem:[%s4] sm:$0xff]
    %v62 = vld [vmem:[%s4 + $0x8] sm:$0xff]
    %v63 = vld [vmem:[%s4 + $0x10] sm:$0xff]
    %v64 = vld [vmem:[%s4 + $0x18] sm:$0xff]
    %66 = vset.pattern.permute.xlu0 0
    %67 = vperm.xlu0 %66, %v61
    %v68 = vpop.permute.xlu0 %67
    %71 = vset.pattern.permute.xlu0 0
    %72 = vperm.xlu0 %71, %v62
    %v73 = vpop.permute.xlu0 %72
    %76 = vset.pattern.permute.xlu0 0
    %77 = vperm.xlu0 %76, %v63
    %v78 = vpop.permute.xlu0 %77
    %81 = vset.pattern.permute.xlu0 0
    %82 = vperm.xlu0 %81, %v64
    %v83 = vpop.permute.xlu0 %82
    %vm85 = vcmask 64512
    %v87 = vsel %vm85, %v57, 0
    %v90 = vsel %vm85, %v58, 0
    %v93 = vsel %vm85, %v59, 0
    %v96 = vsel %vm85, %v60, 0
    %v99 = vsel %vm85, %v25, 0
    %v102 = vsel %vm85, %v26, 0
    %v105 = vsel %vm85, %v27, 0
    %v108 = vsel %vm85, %v28, 0
    %v111 = vsel %vm85, %v29, 0
    %v114 = vsel %vm85, %v30, 0
    %v117 = vsel %vm85, %v31, 0
    %v120 = vsel %vm85, %v32, 0
    %v123 = vsel %vm85, %v33, 0
    %v126 = vsel %vm85, %v34, 0
    %v129 = vsel %vm85, %v35, 0
    %v132 = vsel %vm85, %v36, 0
    %v135 = vsel %vm85, %v37, 0
    %v138 = vsel %vm85, %v38, 0
    %v141 = vsel %vm85, %v39, 0
    %v144 = vsel %vm85, %v40, 0
    %v147 = vsel %vm85, %v41, 0
    %v150 = vsel %vm85, %v42, 0
    %v153 = vsel %vm85, %v43, 0
    %v156 = vsel %vm85, %v44, 0
    %v159 = vsel %vm85, %v45, 0
    %v162 = vsel %vm85, %v46, 0
    %v165 = vsel %vm85, %v47, 0
    %v168 = vsel %vm85, %v48, 0
    %v171 = vsel %vm85, %v49, 0
    %v174 = vsel %vm85, %v50, 0
    %v177 = vsel %vm85, %v51, 0
    %v180 = vsel %vm85, %v52, 0
    %v183 = vsel %vm85, %v53, 0
    %v186 = vsel %vm85, %v54, 0
    %v189 = vsel %vm85, %v55, 0
    %v192 = vsel %vm85, %v56, 0
    %194 = vmatpush.xpose.msra.mxu0 %v144
    %195 = vmatpush.xpose.msra.mxu0 %v141
    %196 = vmatpush.xpose.msra.mxu0 %v138
    %197 = vmatpush.xpose.msra.mxu0 %v135
    %198 = vmatpush.xpose.msra.mxu0 %v132
    %199 = vmatpush.xpose.msra.mxu0 %v129
    %200 = vmatpush.xpose.msra.mxu0 %v126
    %201 = vmatpush.xpose.msra.mxu0 %v123
    %202 = vmatpush.xpose.msra.mxu0 %v120
    %203 = vmatpush.xpose.msra.mxu0 %v117
    %204 = vmatpush.xpose.msra.mxu0 %v114
    %205 = vmatpush.xpose.msra.mxu0 %v111
    %206 = vmatpush.xpose.msra.mxu0 %v108
    %207 = vmatpush.xpose.msra.mxu0 %v105
    %208 = vmatpush.xpose.msra.mxu0 %v102
    %209 = vmatpush.xpose.msra.mxu0 %v99
    %210 = vmatmul.f32.gmra.mxu0 %v87
    %v211 = vpop.f32.mrf.mxu0
    %v212 = vadd.f32 %v68, %v211
    %213 = vmatmul.f32.gmra.mxu0 %v90
    %v214 = vpop.f32.mrf.mxu0
    %v215 = vadd.f32 %v73, %v214
    %216 = vmatmul.f32.gmra.mxu0 %v93
    %v217 = vpop.f32.mrf.mxu0
    %v218 = vadd.f32 %v78, %v217
    %219 = vmatmul.f32.gmra.mxu0 %v96
    %v220 = vpop.f32.mrf.mxu0
    %v221 = vadd.f32 %v83, %v220
    %222 = vdwg.mxu0
    %223 = vmatpush.xpose.msra.mxu0 %v192
    %224 = vmatpush.xpose.msra.mxu0 %v189
    %225 = vmatpush.xpose.msra.mxu0 %v186
    %226 = vmatpush.xpose.msra.mxu0 %v183
    %227 = vmatpush.xpose.msra.mxu0 %v180
    %228 = vmatpush.xpose.msra.mxu0 %v177
    %229 = vmatpush.xpose.msra.mxu0 %v174
    %230 = vmatpush.xpose.msra.mxu0 %v171
    %231 = vmatpush.xpose.msra.mxu0 %v168
    %232 = vmatpush.xpose.msra.mxu0 %v165
    %233 = vmatpush.xpose.msra.mxu0 %v162
    %234 = vmatpush.xpose.msra.mxu0 %v159
    %235 = vmatpush.xpose.msra.mxu0 %v156
    %236 = vmatpush.xpose.msra.mxu0 %v153
    %237 = vmatpush.xpose.msra.mxu0 %v150
    %238 = vmatpush.xpose.msra.mxu0 %v147
    %239 = vmatmul.f32.gmra.mxu0 %v87
    %v240 = vpop.f32.mrf.mxu0
    %v241 = vadd.f32 %v68, %v240
    %242 = vmatmul.f32.gmra.mxu0 %v90
    %v243 = vpop.f32.mrf.mxu0
    %v244 = vadd.f32 %v73, %v243
    %245 = vmatmul.f32.gmra.mxu0 %v93
    %v246 = vpop.f32.mrf.mxu0
    %v247 = vadd.f32 %v78, %v246
    %248 = vmatmul.f32.gmra.mxu0 %v96
    %v249 = vpop.f32.mrf.mxu0
    %v250 = vadd.f32 %v83, %v249
    %251 = vdwg.mxu0
    %v252 = vmul.f32 %v212, 0.01
    %v253 = vmul.f32 %v241, 0.01
    %v254 = vmul.f32 %v215, 0.01
    %v255 = vmul.f32 %v244, 0.01
    %v256 = vmul.f32 %v218, 0.01
    %v257 = vmul.f32 %v247, 0.01
    %v258 = vmul.f32 %v221, 0.01
    %v259 = vmul.f32 %v250, 0.01
    %v260 = vmax.f32 %v212, %v252
    %v261 = vmax.f32 %v241, %v253
    %v262 = vmax.f32 %v215, %v254
    %v263 = vmax.f32 %v244, %v255
    %v264 = vmax.f32 %v218, %v256
    %v265 = vmax.f32 %v247, %v257
    %v266 = vmax.f32 %v221, %v258
    %v267 = vmax.f32 %v250, %v259
    %s268 = scalar_lea.vmem %s4, 32
    %v269 = vld [vmem:[%s268] sm:$0xff]
    %v270 = vld [vmem:[%s268 + $0x8] sm:$0xff]
    %v271 = vld [vmem:[%s268 + $0x10] sm:$0xff]
    %v272 = vld [vmem:[%s268 + $0x18] sm:$0xff]
    %s273 = scalar_lea.vmem %s4, 64
    %v274 = vld [vmem:[%s273] sm:$0xff]
    %v275 = vld [vmem:[%s273 + $0x8] sm:$0xff]
    %v276 = vld [vmem:[%s273 + $0x10] sm:$0xff]
    %v277 = vld [vmem:[%s273 + $0x18] sm:$0xff]
    %v278 = vadd.f32 %v260, %v262
    %v279 = vadd.f32 %v278, %v264
    %v280 = vadd.f32 %v279, %v266
    %v281 = vrot.slane %v280, 4
    %v282 = vadd.f32 %v280, %v281
    %v283 = vrot.slane %v282, 2
    %v284 = vadd.f32 %v282, %v283
    %v285 = vrot.slane %v284, 1
    %v286 = vadd.f32 %v284, %v285
    %v287 = vadd.f32 %v261, %v263
    %v288 = vadd.f32 %v287, %v265
    %v289 = vadd.f32 %v288, %v267
    %v290 = vrot.slane %v289, 4
    %v291 = vadd.f32 %v289, %v290
    %v292 = vrot.slane %v291, 2
    %v293 = vadd.f32 %v291, %v292
    %v294 = vrot.slane %v293, 1
    %v295 = vadd.f32 %v293, %v294
    %v296 = vmul.f32 %v286, 0.03125
    %v297 = vmul.f32 %v295, 0.03125
    %v298 = vmul.f32 %v260, %v260
    %v299 = vmul.f32 %v261, %v261
    %v300 = vmul.f32 %v262, %v262
    %v301 = vmul.f32 %v263, %v263
    %v302 = vmul.f32 %v264, %v264
    %v303 = vmul.f32 %v265, %v265
    %v304 = vmul.f32 %v266, %v266
    %v305 = vmul.f32 %v267, %v267
    %v306 = vadd.f32 %v298, %v300
    %v307 = vadd.f32 %v306, %v302
    %v308 = vadd.f32 %v307, %v304
    %v309 = vrot.slane %v308, 4
    %v310 = vadd.f32 %v308, %v309
    %v311 = vrot.slane %v310, 2
    %v312 = vadd.f32 %v310, %v311
    %v313 = vrot.slane %v312, 1
    %v314 = vadd.f32 %v312, %v313
    %v315 = vadd.f32 %v299, %v301
    %v316 = vadd.f32 %v315, %v303
    %v317 = vadd.f32 %v316, %v305
    %v318 = vrot.slane %v317, 4
    %v319 = vadd.f32 %v317, %v318
    %v320 = vrot.slane %v319, 2
    %v321 = vadd.f32 %v319, %v320
    %v322 = vrot.slane %v321, 1
    %v323 = vadd.f32 %v321, %v322
    %v324 = vmul.f32 %v314, 0.03125
    %v325 = vmul.f32 %v323, 0.03125
    %v326 = vmul.f32 %v296, %v296
    %v327 = vmul.f32 %v297, %v297
    %v328 = vsub.f32 %v324, %v326
    %v329 = vsub.f32 %v325, %v327
    %v330 = vmax.f32 %v328, 0.0
    %v331 = vmax.f32 %v329, 0.0
    %v332 = vadd.f32 %v330, 1e-05
    %v333 = vadd.f32 %v331, 1e-05
    %v334 = vrsqrt.pop %v332
    %v335 = vmul.f32 %v334, %v332
    %v336 = vmul.f32 %v335, %v334
    %v337 = vmul.f32 0.5, %v336
    %v338 = vsub.f32 1.5, %v337
    %v339 = vmul.f32 %v334, %v338
    %vm340 = vweird.f32 %v332
    %vm341 = vweird.f32 %v334
    %vm342 = vmor %vm340, %vm341
    %v343 = vsel %vm342, %v334, %v339
    %v344 = vrsqrt.pop %v333
    %v345 = vmul.f32 %v344, %v333
    %v346 = vmul.f32 %v345, %v344
    %v347 = vmul.f32 0.5, %v346
    %v348 = vsub.f32 1.5, %v347
    %v349 = vmul.f32 %v344, %v348
    %vm350 = vweird.f32 %v333
    %vm351 = vweird.f32 %v344
    %vm352 = vmor %vm350, %vm351
    %v353 = vsel %vm352, %v344, %v349
    %v354 = vsub.f32 %v260, %v296
    %v355 = vsub.f32 %v261, %v297
    %v356 = vsub.f32 %v262, %v296
    %v357 = vsub.f32 %v263, %v297
    %v358 = vsub.f32 %v264, %v296
    %v359 = vsub.f32 %v265, %v297
    %v360 = vsub.f32 %v266, %v296
    %v361 = vsub.f32 %v267, %v297
    %v362 = vmul.f32 %v354, %v343
    %v363 = vmul.f32 %v355, %v353
    %v364 = vmul.f32 %v356, %v343
    %v365 = vmul.f32 %v357, %v353
    %v366 = vmul.f32 %v358, %v343
    %v367 = vmul.f32 %v359, %v353
    %v368 = vmul.f32 %v360, %v343
    %v369 = vmul.f32 %v361, %v353
    %371 = vset.pattern.permute.xlu0 0
    %372 = vperm.xlu0 %371, %v269
    %v373 = vpop.permute.xlu0 %372
    %376 = vset.pattern.permute.xlu0 0
    %377 = vperm.xlu0 %376, %v270
    %v378 = vpop.permute.xlu0 %377
    %381 = vset.pattern.permute.xlu0 0
    %382 = vperm.xlu0 %381, %v271
    %v383 = vpop.permute.xlu0 %382
    %386 = vset.pattern.permute.xlu0 0
    %387 = vperm.xlu0 %386, %v272
    %v388 = vpop.permute.xlu0 %387
    %v390 = vmul.f32 %v362, %v373
    %v391 = vmul.f32 %v363, %v373
    %v392 = vmul.f32 %v364, %v378
    %v393 = vmul.f32 %v365, %v378
    %v394 = vmul.f32 %v366, %v383
    %v395 = vmul.f32 %v367, %v383
    %v396 = vmul.f32 %v368, %v388
    %v397 = vmul.f32 %v369, %v388
    %399 = vset.pattern.permute.xlu0 0
    %400 = vperm.xlu0 %399, %v274
    %v401 = vpop.permute.xlu0 %400
    %404 = vset.pattern.permute.xlu0 0
    %405 = vperm.xlu0 %404, %v275
    %v406 = vpop.permute.xlu0 %405
    %409 = vset.pattern.permute.xlu0 0
    %410 = vperm.xlu0 %409, %v276
    %v411 = vpop.permute.xlu0 %410
    %414 = vset.pattern.permute.xlu0 0
    %415 = vperm.xlu0 %414, %v277
    %v416 = vpop.permute.xlu0 %415
    %v418 = vadd.f32 %v390, %v401
    %v419 = vadd.f32 %v391, %v401
    %v420 = vadd.f32 %v392, %v406
    %v421 = vadd.f32 %v393, %v406
    %v422 = vadd.f32 %v394, %v411
    %v423 = vadd.f32 %v395, %v411
    %v424 = vadd.f32 %v396, %v416
    %v425 = vadd.f32 %v397, %v416
    %v426 = vld [vmem:[%s2] sm:$0xff]
    %v427 = vld [vmem:[%s2 + $0x8] sm:$0xff]
    %v428 = vld [vmem:[%s2 + $0x10] sm:$0xff]
    %v429 = vld [vmem:[%s2 + $0x18] sm:$0xff]
    %s430 = scalar_lea.vmem %s4, 96
    %v431 = vld [vmem:[%s430] sm:$0xff]
    %v432 = vld [vmem:[%s430 + $0x8] sm:$0xff]
    %v433 = vld [vmem:[%s430 + $0x10] sm:$0xff]
    %v434 = vld [vmem:[%s430 + $0x18] sm:$0xff]
    %436 = vset.pattern.permute.xlu0 0
    %437 = vperm.xlu0 %436, %v431
    %v438 = vpop.permute.xlu0 %437
    %441 = vset.pattern.permute.xlu0 0
    %442 = vperm.xlu0 %441, %v432
    %v443 = vpop.permute.xlu0 %442
    %446 = vset.pattern.permute.xlu0 0
    %447 = vperm.xlu0 %446, %v433
    %v448 = vpop.permute.xlu0 %447
    %451 = vset.pattern.permute.xlu0 0
    %452 = vperm.xlu0 %451, %v434
    %v453 = vpop.permute.xlu0 %452
    %vm455 = vcmask 261120
    %v457 = vsel %vm455, %v426, 0
    %v460 = vsel %vm455, %v427, 0
    %v463 = vsel %vm455, %v428, 0
    %v466 = vsel %vm455, %v429, 0
    %468 = vmatpush.msra.mxu0 0.0
    %469 = vmatpush.msra.mxu0 0.0
    %470 = vmatpush.msra.mxu0 0.0
    %471 = vmatpush.msra.mxu0 0.0
    %472 = vmatpush.msra.mxu0 0.0
    %473 = vmatpush.msra.mxu0 0.0
    %474 = vmatpush.msra.mxu0 0.0
    %475 = vmatpush.msra.mxu0 0.0
    %476 = vmatpush.msra.mxu0 0.0
    %477 = vmatpush.msra.mxu0 0.0
    %478 = vmatpush.msra.mxu0 0.0
    %479 = vmatpush.msra.mxu0 0.0
    %480 = vmatpush.msra.mxu0 %v424
    %481 = vmatpush.msra.mxu0 %v422
    %482 = vmatpush.msra.mxu0 %v420
    %483 = vmatpush.msra.mxu0 %v418
    %484 = vmatmul.f32.gmra.mxu0 %v457
    %v485 = vpop.f32.mrf.mxu0
    %v486 = vadd.f32 %v438, %v485
    %487 = vmatmul.f32.gmra.mxu0 %v460
    %v488 = vpop.f32.mrf.mxu0
    %v489 = vadd.f32 %v443, %v488
    %490 = vmatmul.f32.gmra.mxu0 %v463
    %v491 = vpop.f32.mrf.mxu0
    %v492 = vadd.f32 %v448, %v491
    %493 = vmatmul.f32.gmra.mxu0 %v466
    %v494 = vpop.f32.mrf.mxu0
    %v495 = vadd.f32 %v453, %v494
    %496 = vdwg.mxu0
    %497 = vmatpush.msra.mxu0 0.0
    %498 = vmatpush.msra.mxu0 0.0
    %499 = vmatpush.msra.mxu0 0.0
    %500 = vmatpush.msra.mxu0 0.0
    %501 = vmatpush.msra.mxu0 0.0
    %502 = vmatpush.msra.mxu0 0.0
    %503 = vmatpush.msra.mxu0 0.0
    %504 = vmatpush.msra.mxu0 0.0
    %505 = vmatpush.msra.mxu0 0.0
    %506 = vmatpush.msra.mxu0 0.0
    %507 = vmatpush.msra.mxu0 0.0
    %508 = vmatpush.msra.mxu0 0.0
    %509 = vmatpush.msra.mxu0 %v425
    %510 = vmatpush.msra.mxu0 %v423
    %511 = vmatpush.msra.mxu0 %v421
    %512 = vmatpush.msra.mxu0 %v419
    %513 = vmatmul.f32.gmra.mxu0 %v457
    %v514 = vpop.f32.mrf.mxu0
    %v515 = vadd.f32 %v438, %v514
    %516 = vmatmul.f32.gmra.mxu0 %v460
    %v517 = vpop.f32.mrf.mxu0
    %v518 = vadd.f32 %v443, %v517
    %519 = vmatmul.f32.gmra.mxu0 %v463
    %v520 = vpop.f32.mrf.mxu0
    %v521 = vadd.f32 %v448, %v520
    %522 = vmatmul.f32.gmra.mxu0 %v466
    %v523 = vpop.f32.mrf.mxu0
    %v524 = vadd.f32 %v453, %v523
    %525 = vdwg.mxu0
    %v526 = vmul.f32 %v486, 0.01
    %v527 = vmul.f32 %v515, 0.01
    %v528 = vmul.f32 %v489, 0.01
    %v529 = vmul.f32 %v518, 0.01
    %v530 = vmul.f32 %v492, 0.01
    %v531 = vmul.f32 %v521, 0.01
    %v532 = vmul.f32 %v495, 0.01
    %v533 = vmul.f32 %v524, 0.01
    %v534 = vmax.f32 %v486, %v526
    %v535 = vmax.f32 %v515, %v527
    %v536 = vmax.f32 %v489, %v528
    %v537 = vmax.f32 %v518, %v529
    %v538 = vmax.f32 %v492, %v530
    %v539 = vmax.f32 %v521, %v531
    %v540 = vmax.f32 %v495, %v532
    %v541 = vmax.f32 %v524, %v533
    %v542 = vadd.f32 %v418, %v534
    %v543 = vadd.f32 %v419, %v535
    %v544 = vadd.f32 %v420, %v536
    %v545 = vadd.f32 %v421, %v537
    %v546 = vadd.f32 %v422, %v538
    %v547 = vadd.f32 %v423, %v539
    %v548 = vadd.f32 %v424, %v540
    %v549 = vadd.f32 %v425, %v541
    %s550 = scalar_lea.vmem %s4, 128
    %v551 = vld [vmem:[%s550] sm:$0xff]
    %v552 = vld [vmem:[%s550 + $0x8] sm:$0xff]
    %v553 = vld [vmem:[%s550 + $0x10] sm:$0xff]
    %v554 = vld [vmem:[%s550 + $0x18] sm:$0xff]
    %s555 = scalar_lea.vmem %s4, 160
    %v556 = vld [vmem:[%s555] sm:$0xff]
    %v557 = vld [vmem:[%s555 + $0x8] sm:$0xff]
    %v558 = vld [vmem:[%s555 + $0x10] sm:$0xff]
    %v559 = vld [vmem:[%s555 + $0x18] sm:$0xff]
    %v560 = vadd.f32 %v542, %v544
    %v561 = vadd.f32 %v560, %v546
    %v562 = vadd.f32 %v561, %v548
    %v563 = vrot.slane %v562, 4
    %v564 = vadd.f32 %v562, %v563
    %v565 = vrot.slane %v564, 2
    %v566 = vadd.f32 %v564, %v565
    %v567 = vrot.slane %v566, 1
    %v568 = vadd.f32 %v566, %v567
    %v569 = vadd.f32 %v543, %v545
    %v570 = vadd.f32 %v569, %v547
    %v571 = vadd.f32 %v570, %v549
    %v572 = vrot.slane %v571, 4
    %v573 = vadd.f32 %v571, %v572
    %v574 = vrot.slane %v573, 2
    %v575 = vadd.f32 %v573, %v574
    %v576 = vrot.slane %v575, 1
    %v577 = vadd.f32 %v575, %v576
    %v578 = vmul.f32 %v568, 0.03125
    %v579 = vmul.f32 %v577, 0.03125
    %v580 = vmul.f32 %v542, %v542
    %v581 = vmul.f32 %v543, %v543
    %v582 = vmul.f32 %v544, %v544
    %v583 = vmul.f32 %v545, %v545
    %v584 = vmul.f32 %v546, %v546
    %v585 = vmul.f32 %v547, %v547
    %v586 = vmul.f32 %v548, %v548
    %v587 = vmul.f32 %v549, %v549
    %v588 = vadd.f32 %v580, %v582
    %v589 = vadd.f32 %v588, %v584
    %v590 = vadd.f32 %v589, %v586
    %v591 = vrot.slane %v590, 4
    %v592 = vadd.f32 %v590, %v591
    %v593 = vrot.slane %v592, 2
    %v594 = vadd.f32 %v592, %v593
    %v595 = vrot.slane %v594, 1
    %v596 = vadd.f32 %v594, %v595
    %v597 = vadd.f32 %v581, %v583
    %v598 = vadd.f32 %v597, %v585
    %v599 = vadd.f32 %v598, %v587
    %v600 = vrot.slane %v599, 4
    %v601 = vadd.f32 %v599, %v600
    %v602 = vrot.slane %v601, 2
    %v603 = vadd.f32 %v601, %v602
    %v604 = vrot.slane %v603, 1
    %v605 = vadd.f32 %v603, %v604
    %v606 = vmul.f32 %v596, 0.03125
    %v607 = vmul.f32 %v605, 0.03125
    %v608 = vmul.f32 %v578, %v578
    %v609 = vmul.f32 %v579, %v579
    %v610 = vsub.f32 %v606, %v608
    %v611 = vsub.f32 %v607, %v609
    %v612 = vmax.f32 %v610, 0.0
    %v613 = vmax.f32 %v611, 0.0
    %v614 = vadd.f32 %v612, 1e-05
    %v615 = vadd.f32 %v613, 1e-05
    %v616 = vrsqrt.pop %v614
    %v617 = vmul.f32 %v616, %v614
    %v618 = vmul.f32 %v617, %v616
    %v619 = vmul.f32 0.5, %v618
    %v620 = vsub.f32 1.5, %v619
    %v621 = vmul.f32 %v616, %v620
    %vm622 = vweird.f32 %v614
    %vm623 = vweird.f32 %v616
    %vm624 = vmor %vm622, %vm623
    %v625 = vsel %vm624, %v616, %v621
    %v626 = vrsqrt.pop %v615
    %v627 = vmul.f32 %v626, %v615
    %v628 = vmul.f32 %v627, %v626
    %v629 = vmul.f32 0.5, %v628
    %v630 = vsub.f32 1.5, %v629
    %v631 = vmul.f32 %v626, %v630
    %vm632 = vweird.f32 %v615
    %vm633 = vweird.f32 %v626
    %vm634 = vmor %vm632, %vm633
    %v635 = vsel %vm634, %v626, %v631
    %v636 = vsub.f32 %v542, %v578
    %v637 = vsub.f32 %v543, %v579
    %v638 = vsub.f32 %v544, %v578
    %v639 = vsub.f32 %v545, %v579
    %v640 = vsub.f32 %v546, %v578
    %v641 = vsub.f32 %v547, %v579
    %v642 = vsub.f32 %v548, %v578
    %v643 = vsub.f32 %v549, %v579
    %v644 = vmul.f32 %v636, %v625
    %v645 = vmul.f32 %v637, %v635
    %v646 = vmul.f32 %v638, %v625
    %v647 = vmul.f32 %v639, %v635
    %v648 = vmul.f32 %v640, %v625
    %v649 = vmul.f32 %v641, %v635
    %v650 = vmul.f32 %v642, %v625
    %v651 = vmul.f32 %v643, %v635
    %653 = vset.pattern.permute.xlu0 0
    %654 = vperm.xlu0 %653, %v551
    %v655 = vpop.permute.xlu0 %654
    %658 = vset.pattern.permute.xlu0 0
    %659 = vperm.xlu0 %658, %v552
    %v660 = vpop.permute.xlu0 %659
    %663 = vset.pattern.permute.xlu0 0
    %664 = vperm.xlu0 %663, %v553
    %v665 = vpop.permute.xlu0 %664
    %668 = vset.pattern.permute.xlu0 0
    %669 = vperm.xlu0 %668, %v554
    %v670 = vpop.permute.xlu0 %669
    %v672 = vmul.f32 %v644, %v655
    %v673 = vmul.f32 %v645, %v655
    %v674 = vmul.f32 %v646, %v660
    %v675 = vmul.f32 %v647, %v660
    %v676 = vmul.f32 %v648, %v665
    %v677 = vmul.f32 %v649, %v665
    %v678 = vmul.f32 %v650, %v670
    %v679 = vmul.f32 %v651, %v670
    %681 = vset.pattern.permute.xlu0 0
    %682 = vperm.xlu0 %681, %v556
    %v683 = vpop.permute.xlu0 %682
    %686 = vset.pattern.permute.xlu0 0
    %687 = vperm.xlu0 %686, %v557
    %v688 = vpop.permute.xlu0 %687
    %691 = vset.pattern.permute.xlu0 0
    %692 = vperm.xlu0 %691, %v558
    %v693 = vpop.permute.xlu0 %692
    %696 = vset.pattern.permute.xlu0 0
    %697 = vperm.xlu0 %696, %v559
    %v698 = vpop.permute.xlu0 %697
    %v700 = vadd.f32 %v672, %v683
    %v701 = vadd.f32 %v673, %v683
    %v702 = vadd.f32 %v674, %v688
    %v703 = vadd.f32 %v675, %v688
    %v704 = vadd.f32 %v676, %v693
    %v705 = vadd.f32 %v677, %v693
    %v706 = vadd.f32 %v678, %v698
    %v707 = vadd.f32 %v679, %v698
    %s708 = scalar_lea.vmem %s2, 32
    %v709 = vld [vmem:[%s708] sm:$0xff]
    %v710 = vld [vmem:[%s708 + $0x8] sm:$0xff]
    %v711 = vld [vmem:[%s708 + $0x10] sm:$0xff]
    %v712 = vld [vmem:[%s708 + $0x18] sm:$0xff]
    %s713 = scalar_lea.vmem %s4, 192
    %v714 = vld [vmem:[%s713] sm:$0xff]
    %v715 = vld [vmem:[%s713 + $0x8] sm:$0xff]
    %v716 = vld [vmem:[%s713 + $0x10] sm:$0xff]
    %v717 = vld [vmem:[%s713 + $0x18] sm:$0xff]
    %719 = vset.pattern.permute.xlu0 0
    %720 = vperm.xlu0 %719, %v714
    %v721 = vpop.permute.xlu0 %720
    %724 = vset.pattern.permute.xlu0 0
    %725 = vperm.xlu0 %724, %v715
    %v726 = vpop.permute.xlu0 %725
    %729 = vset.pattern.permute.xlu0 0
    %730 = vperm.xlu0 %729, %v716
    %v731 = vpop.permute.xlu0 %730
    %734 = vset.pattern.permute.xlu0 0
    %735 = vperm.xlu0 %734, %v717
    %v736 = vpop.permute.xlu0 %735
    %v739 = vsel %vm455, %v709, 0
    %v742 = vsel %vm455, %v710, 0
    %v745 = vsel %vm455, %v711, 0
    %v748 = vsel %vm455, %v712, 0
    %750 = vmatpush.msra.mxu0 0.0
    %751 = vmatpush.msra.mxu0 0.0
    %752 = vmatpush.msra.mxu0 0.0
    %753 = vmatpush.msra.mxu0 0.0
    %754 = vmatpush.msra.mxu0 0.0
    %755 = vmatpush.msra.mxu0 0.0
    %756 = vmatpush.msra.mxu0 0.0
    %757 = vmatpush.msra.mxu0 0.0
    %758 = vmatpush.msra.mxu0 0.0
    %759 = vmatpush.msra.mxu0 0.0
    %760 = vmatpush.msra.mxu0 0.0
    %761 = vmatpush.msra.mxu0 0.0
    %762 = vmatpush.msra.mxu0 %v706
    %763 = vmatpush.msra.mxu0 %v704
    %764 = vmatpush.msra.mxu0 %v702
    %765 = vmatpush.msra.mxu0 %v700
    %766 = vmatmul.f32.gmra.mxu0 %v739
    %v767 = vpop.f32.mrf.mxu0
    %v768 = vadd.f32 %v721, %v767
    %769 = vmatmul.f32.gmra.mxu0 %v742
    %v770 = vpop.f32.mrf.mxu0
    %v771 = vadd.f32 %v726, %v770
    %772 = vmatmul.f32.gmra.mxu0 %v745
    %v773 = vpop.f32.mrf.mxu0
    %v774 = vadd.f32 %v731, %v773
    %775 = vmatmul.f32.gmra.mxu0 %v748
    %v776 = vpop.f32.mrf.mxu0
    %v777 = vadd.f32 %v736, %v776
    %778 = vdwg.mxu0
    %779 = vmatpush.msra.mxu0 0.0
    %780 = vmatpush.msra.mxu0 0.0
    %781 = vmatpush.msra.mxu0 0.0
    %782 = vmatpush.msra.mxu0 0.0
    %783 = vmatpush.msra.mxu0 0.0
    %784 = vmatpush.msra.mxu0 0.0
    %785 = vmatpush.msra.mxu0 0.0
    %786 = vmatpush.msra.mxu0 0.0
    %787 = vmatpush.msra.mxu0 0.0
    %788 = vmatpush.msra.mxu0 0.0
    %789 = vmatpush.msra.mxu0 0.0
    %790 = vmatpush.msra.mxu0 0.0
    %791 = vmatpush.msra.mxu0 %v707
    %792 = vmatpush.msra.mxu0 %v705
    %793 = vmatpush.msra.mxu0 %v703
    %794 = vmatpush.msra.mxu0 %v701
    %795 = vmatmul.f32.gmra.mxu0 %v739
    %v796 = vpop.f32.mrf.mxu0
    %v797 = vadd.f32 %v721, %v796
    %798 = vmatmul.f32.gmra.mxu0 %v742
    %v799 = vpop.f32.mrf.mxu0
    %v800 = vadd.f32 %v726, %v799
    %801 = vmatmul.f32.gmra.mxu0 %v745
    %v802 = vpop.f32.mrf.mxu0
    %v803 = vadd.f32 %v731, %v802
    %804 = vmatmul.f32.gmra.mxu0 %v748
    %v805 = vpop.f32.mrf.mxu0
    %v806 = vadd.f32 %v736, %v805
    %807 = vdwg.mxu0
    %v808 = vmul.f32 %v768, 0.01
    %v809 = vmul.f32 %v797, 0.01
    %v810 = vmul.f32 %v771, 0.01
    %v811 = vmul.f32 %v800, 0.01
    %v812 = vmul.f32 %v774, 0.01
    %v813 = vmul.f32 %v803, 0.01
    %v814 = vmul.f32 %v777, 0.01
    %v815 = vmul.f32 %v806, 0.01
    %v816 = vmax.f32 %v768, %v808
    %v817 = vmax.f32 %v797, %v809
    %v818 = vmax.f32 %v771, %v810
    %v819 = vmax.f32 %v800, %v811
    %v820 = vmax.f32 %v774, %v812
    %v821 = vmax.f32 %v803, %v813
    %v822 = vmax.f32 %v777, %v814
    %v823 = vmax.f32 %v806, %v815
    %v824 = vadd.f32 %v700, %v816
    %v825 = vadd.f32 %v701, %v817
    %v826 = vadd.f32 %v702, %v818
    %v827 = vadd.f32 %v703, %v819
    %v828 = vadd.f32 %v704, %v820
    %v829 = vadd.f32 %v705, %v821
    %v830 = vadd.f32 %v706, %v822
    %v831 = vadd.f32 %v707, %v823
    %s832 = scalar_lea.vmem %s4, 224
    %v833 = vld [vmem:[%s832] sm:$0xff]
    %v834 = vld [vmem:[%s832 + $0x8] sm:$0xff]
    %v835 = vld [vmem:[%s832 + $0x10] sm:$0xff]
    %v836 = vld [vmem:[%s832 + $0x18] sm:$0xff]
    %s837 = scalar_lea.vmem %s4, 256
    %v838 = vld [vmem:[%s837] sm:$0xff]
    %v839 = vld [vmem:[%s837 + $0x8] sm:$0xff]
    %v840 = vld [vmem:[%s837 + $0x10] sm:$0xff]
    %v841 = vld [vmem:[%s837 + $0x18] sm:$0xff]
    %v842 = vadd.f32 %v824, %v826
    %v843 = vadd.f32 %v842, %v828
    %v844 = vadd.f32 %v843, %v830
    %v845 = vrot.slane %v844, 4
    %v846 = vadd.f32 %v844, %v845
    %v847 = vrot.slane %v846, 2
    %v848 = vadd.f32 %v846, %v847
    %v849 = vrot.slane %v848, 1
    %v850 = vadd.f32 %v848, %v849
    %v851 = vadd.f32 %v825, %v827
    %v852 = vadd.f32 %v851, %v829
    %v853 = vadd.f32 %v852, %v831
    %v854 = vrot.slane %v853, 4
    %v855 = vadd.f32 %v853, %v854
    %v856 = vrot.slane %v855, 2
    %v857 = vadd.f32 %v855, %v856
    %v858 = vrot.slane %v857, 1
    %v859 = vadd.f32 %v857, %v858
    %v860 = vmul.f32 %v850, 0.03125
    %v861 = vmul.f32 %v859, 0.03125
    %v862 = vmul.f32 %v824, %v824
    %v863 = vmul.f32 %v825, %v825
    %v864 = vmul.f32 %v826, %v826
    %v865 = vmul.f32 %v827, %v827
    %v866 = vmul.f32 %v828, %v828
    %v867 = vmul.f32 %v829, %v829
    %v868 = vmul.f32 %v830, %v830
    %v869 = vmul.f32 %v831, %v831
    %v870 = vadd.f32 %v862, %v864
    %v871 = vadd.f32 %v870, %v866
    %v872 = vadd.f32 %v871, %v868
    %v873 = vrot.slane %v872, 4
    %v874 = vadd.f32 %v872, %v873
    %v875 = vrot.slane %v874, 2
    %v876 = vadd.f32 %v874, %v875
    %v877 = vrot.slane %v876, 1
    %v878 = vadd.f32 %v876, %v877
    %v879 = vadd.f32 %v863, %v865
    %v880 = vadd.f32 %v879, %v867
    %v881 = vadd.f32 %v880, %v869
    %v882 = vrot.slane %v881, 4
    %v883 = vadd.f32 %v881, %v882
    %v884 = vrot.slane %v883, 2
    %v885 = vadd.f32 %v883, %v884
    %v886 = vrot.slane %v885, 1
    %v887 = vadd.f32 %v885, %v886
    %v888 = vmul.f32 %v878, 0.03125
    %v889 = vmul.f32 %v887, 0.03125
    %v890 = vmul.f32 %v860, %v860
    %v891 = vmul.f32 %v861, %v861
    %v892 = vsub.f32 %v888, %v890
    %v893 = vsub.f32 %v889, %v891
    %v894 = vmax.f32 %v892, 0.0
    %v895 = vmax.f32 %v893, 0.0
    %v896 = vadd.f32 %v894, 1e-05
    %v897 = vadd.f32 %v895, 1e-05
    %v898 = vrsqrt.pop %v896
    %v899 = vmul.f32 %v898, %v896
    %v900 = vmul.f32 %v899, %v898
    %v901 = vmul.f32 0.5, %v900
    %v902 = vsub.f32 1.5, %v901
    %v903 = vmul.f32 %v898, %v902
    %vm904 = vweird.f32 %v896
    %vm905 = vweird.f32 %v898
    %vm906 = vmor %vm904, %vm905
    %v907 = vsel %vm906, %v898, %v903
    %v908 = vrsqrt.pop %v897
    %v909 = vmul.f32 %v908, %v897
    %v910 = vmul.f32 %v909, %v908
    %v911 = vmul.f32 0.5, %v910
    %v912 = vsub.f32 1.5, %v911
    %v913 = vmul.f32 %v908, %v912
    %vm914 = vweird.f32 %v897
    %vm915 = vweird.f32 %v908
    %vm916 = vmor %vm914, %vm915
    %v917 = vsel %vm916, %v908, %v913
    %v918 = vsub.f32 %v824, %v860
    %v919 = vsub.f32 %v825, %v861
    %v920 = vsub.f32 %v826, %v860
    %v921 = vsub.f32 %v827, %v861
    %v922 = vsub.f32 %v828, %v860
    %v923 = vsub.f32 %v829, %v861
    %v924 = vsub.f32 %v830, %v860
    %v925 = vsub.f32 %v831, %v861
    %v926 = vmul.f32 %v918, %v907
    %v927 = vmul.f32 %v919, %v917
    %v928 = vmul.f32 %v920, %v907
    %v929 = vmul.f32 %v921, %v917
    %v930 = vmul.f32 %v922, %v907
    %v931 = vmul.f32 %v923, %v917
    %v932 = vmul.f32 %v924, %v907
    %v933 = vmul.f32 %v925, %v917
    %935 = vset.pattern.permute.xlu0 0
    %936 = vperm.xlu0 %935, %v833
    %v937 = vpop.permute.xlu0 %936
    %940 = vset.pattern.permute.xlu0 0
    %941 = vperm.xlu0 %940, %v834
    %v942 = vpop.permute.xlu0 %941
    %945 = vset.pattern.permute.xlu0 0
    %946 = vperm.xlu0 %945, %v835
    %v947 = vpop.permute.xlu0 %946
    %950 = vset.pattern.permute.xlu0 0
    %951 = vperm.xlu0 %950, %v836
    %v952 = vpop.permute.xlu0 %951
    %v954 = vmul.f32 %v926, %v937
    %v955 = vmul.f32 %v927, %v937
    %v956 = vmul.f32 %v928, %v942
    %v957 = vmul.f32 %v929, %v942
    %v958 = vmul.f32 %v930, %v947
    %v959 = vmul.f32 %v931, %v947
    %v960 = vmul.f32 %v932, %v952
    %v961 = vmul.f32 %v933, %v952
    %963 = vset.pattern.permute.xlu0 0
    %964 = vperm.xlu0 %963, %v838
    %v965 = vpop.permute.xlu0 %964
    %968 = vset.pattern.permute.xlu0 0
    %969 = vperm.xlu0 %968, %v839
    %v970 = vpop.permute.xlu0 %969
    %973 = vset.pattern.permute.xlu0 0
    %974 = vperm.xlu0 %973, %v840
    %v975 = vpop.permute.xlu0 %974
    %978 = vset.pattern.permute.xlu0 0
    %979 = vperm.xlu0 %978, %v841
    %v980 = vpop.permute.xlu0 %979
    %v982 = vadd.f32 %v954, %v965
    %v983 = vadd.f32 %v955, %v965
    %v984 = vadd.f32 %v956, %v970
    %v985 = vadd.f32 %v957, %v970
    %v986 = vadd.f32 %v958, %v975
    %v987 = vadd.f32 %v959, %v975
    %v988 = vadd.f32 %v960, %v980
    %v989 = vadd.f32 %v961, %v980
    %s990 = scalar_lea.vmem %s2, 64
    %v991 = vld [vmem:[%s990] sm:$0xff]
    %v992 = vld [vmem:[%s990 + $0x8] sm:$0xff]
    %v993 = vld [vmem:[%s990 + $0x10] sm:$0xff]
    %v994 = vld [vmem:[%s990 + $0x18] sm:$0xff]
    %s995 = scalar_lea.vmem %s4, 288
    %v996 = vld [vmem:[%s995] sm:$0xff]
    %v997 = vld [vmem:[%s995 + $0x8] sm:$0xff]
    %v998 = vld [vmem:[%s995 + $0x10] sm:$0xff]
    %v999 = vld [vmem:[%s995 + $0x18] sm:$0xff]
    %1001 = vset.pattern.permute.xlu0 0
    %1002 = vperm.xlu0 %1001, %v996
    %v1003 = vpop.permute.xlu0 %1002
    %1006 = vset.pattern.permute.xlu0 0
    %1007 = vperm.xlu0 %1006, %v997
    %v1008 = vpop.permute.xlu0 %1007
    %1011 = vset.pattern.permute.xlu0 0
    %1012 = vperm.xlu0 %1011, %v998
    %v1013 = vpop.permute.xlu0 %1012
    %1016 = vset.pattern.permute.xlu0 0
    %1017 = vperm.xlu0 %1016, %v999
    %v1018 = vpop.permute.xlu0 %1017
    %v1021 = vsel %vm455, %v991, 0
    %v1024 = vsel %vm455, %v992, 0
    %v1027 = vsel %vm455, %v993, 0
    %v1030 = vsel %vm455, %v994, 0
    %1032 = vmatpush.msra.mxu0 0.0
    %1033 = vmatpush.msra.mxu0 0.0
    %1034 = vmatpush.msra.mxu0 0.0
    %1035 = vmatpush.msra.mxu0 0.0
    %1036 = vmatpush.msra.mxu0 0.0
    %1037 = vmatpush.msra.mxu0 0.0
    %1038 = vmatpush.msra.mxu0 0.0
    %1039 = vmatpush.msra.mxu0 0.0
    %1040 = vmatpush.msra.mxu0 0.0
    %1041 = vmatpush.msra.mxu0 0.0
    %1042 = vmatpush.msra.mxu0 0.0
    %1043 = vmatpush.msra.mxu0 0.0
    %1044 = vmatpush.msra.mxu0 %v988
    %1045 = vmatpush.msra.mxu0 %v986
    %1046 = vmatpush.msra.mxu0 %v984
    %1047 = vmatpush.msra.mxu0 %v982
    %1048 = vmatmul.f32.gmra.mxu0 %v1021
    %v1049 = vpop.f32.mrf.mxu0
    %v1050 = vadd.f32 %v1003, %v1049
    %1051 = vmatmul.f32.gmra.mxu0 %v1024
    %v1052 = vpop.f32.mrf.mxu0
    %v1053 = vadd.f32 %v1008, %v1052
    %1054 = vmatmul.f32.gmra.mxu0 %v1027
    %v1055 = vpop.f32.mrf.mxu0
    %v1056 = vadd.f32 %v1013, %v1055
    %1057 = vmatmul.f32.gmra.mxu0 %v1030
    %v1058 = vpop.f32.mrf.mxu0
    %v1059 = vadd.f32 %v1018, %v1058
    %1060 = vdwg.mxu0
    %1061 = vmatpush.msra.mxu0 0.0
    %1062 = vmatpush.msra.mxu0 0.0
    %1063 = vmatpush.msra.mxu0 0.0
    %1064 = vmatpush.msra.mxu0 0.0
    %1065 = vmatpush.msra.mxu0 0.0
    %1066 = vmatpush.msra.mxu0 0.0
    %1067 = vmatpush.msra.mxu0 0.0
    %1068 = vmatpush.msra.mxu0 0.0
    %1069 = vmatpush.msra.mxu0 0.0
    %1070 = vmatpush.msra.mxu0 0.0
    %1071 = vmatpush.msra.mxu0 0.0
    %1072 = vmatpush.msra.mxu0 0.0
    %1073 = vmatpush.msra.mxu0 %v989
    %1074 = vmatpush.msra.mxu0 %v987
    %1075 = vmatpush.msra.mxu0 %v985
    %1076 = vmatpush.msra.mxu0 %v983
    %1077 = vmatmul.f32.gmra.mxu0 %v1021
    %v1078 = vpop.f32.mrf.mxu0
    %v1079 = vadd.f32 %v1003, %v1078
    %1080 = vmatmul.f32.gmra.mxu0 %v1024
    %v1081 = vpop.f32.mrf.mxu0
    %v1082 = vadd.f32 %v1008, %v1081
    %1083 = vmatmul.f32.gmra.mxu0 %v1027
    %v1084 = vpop.f32.mrf.mxu0
    %v1085 = vadd.f32 %v1013, %v1084
    %1086 = vmatmul.f32.gmra.mxu0 %v1030
    %v1087 = vpop.f32.mrf.mxu0
    %v1088 = vadd.f32 %v1018, %v1087
    %1089 = vdwg.mxu0
    %v1090 = vmul.f32 %v1050, 0.01
    %v1091 = vmul.f32 %v1079, 0.01
    %v1092 = vmul.f32 %v1053, 0.01
    %v1093 = vmul.f32 %v1082, 0.01
    %v1094 = vmul.f32 %v1056, 0.01
    %v1095 = vmul.f32 %v1085, 0.01
    %v1096 = vmul.f32 %v1059, 0.01
    %v1097 = vmul.f32 %v1088, 0.01
    %v1098 = vmax.f32 %v1050, %v1090
    %v1099 = vmax.f32 %v1079, %v1091
    %v1100 = vmax.f32 %v1053, %v1092
    %v1101 = vmax.f32 %v1082, %v1093
    %v1102 = vmax.f32 %v1056, %v1094
    %v1103 = vmax.f32 %v1085, %v1095
    %v1104 = vmax.f32 %v1059, %v1096
    %v1105 = vmax.f32 %v1088, %v1097
    %v1106 = vadd.f32 %v982, %v1098
    %v1107 = vadd.f32 %v983, %v1099
    %v1108 = vadd.f32 %v984, %v1100
    %v1109 = vadd.f32 %v985, %v1101
    %v1110 = vadd.f32 %v986, %v1102
    %v1111 = vadd.f32 %v987, %v1103
    %v1112 = vadd.f32 %v988, %v1104
    %v1113 = vadd.f32 %v989, %v1105
    %s1114 = scalar_lea.vmem %s4, 320
    %v1115 = vld [vmem:[%s1114] sm:$0xff]
    %v1116 = vld [vmem:[%s1114 + $0x8] sm:$0xff]
    %v1117 = vld [vmem:[%s1114 + $0x10] sm:$0xff]
    %v1118 = vld [vmem:[%s1114 + $0x18] sm:$0xff]
    %s1119 = scalar_lea.vmem %s4, 352
    %v1120 = vld [vmem:[%s1119] sm:$0xff]
    %v1121 = vld [vmem:[%s1119 + $0x8] sm:$0xff]
    %v1122 = vld [vmem:[%s1119 + $0x10] sm:$0xff]
    %v1123 = vld [vmem:[%s1119 + $0x18] sm:$0xff]
    %v1124 = vadd.f32 %v1106, %v1108
    %v1125 = vadd.f32 %v1124, %v1110
    %v1126 = vadd.f32 %v1125, %v1112
    %v1127 = vrot.slane %v1126, 4
    %v1128 = vadd.f32 %v1126, %v1127
    %v1129 = vrot.slane %v1128, 2
    %v1130 = vadd.f32 %v1128, %v1129
    %v1131 = vrot.slane %v1130, 1
    %v1132 = vadd.f32 %v1130, %v1131
    %v1133 = vadd.f32 %v1107, %v1109
    %v1134 = vadd.f32 %v1133, %v1111
    %v1135 = vadd.f32 %v1134, %v1113
    %v1136 = vrot.slane %v1135, 4
    %v1137 = vadd.f32 %v1135, %v1136
    %v1138 = vrot.slane %v1137, 2
    %v1139 = vadd.f32 %v1137, %v1138
    %v1140 = vrot.slane %v1139, 1
    %v1141 = vadd.f32 %v1139, %v1140
    %v1142 = vmul.f32 %v1132, 0.03125
    %v1143 = vmul.f32 %v1141, 0.03125
    %v1144 = vmul.f32 %v1106, %v1106
    %v1145 = vmul.f32 %v1107, %v1107
    %v1146 = vmul.f32 %v1108, %v1108
    %v1147 = vmul.f32 %v1109, %v1109
    %v1148 = vmul.f32 %v1110, %v1110
    %v1149 = vmul.f32 %v1111, %v1111
    %v1150 = vmul.f32 %v1112, %v1112
    %v1151 = vmul.f32 %v1113, %v1113
    %v1152 = vadd.f32 %v1144, %v1146
    %v1153 = vadd.f32 %v1152, %v1148
    %v1154 = vadd.f32 %v1153, %v1150
    %v1155 = vrot.slane %v1154, 4
    %v1156 = vadd.f32 %v1154, %v1155
    %v1157 = vrot.slane %v1156, 2
    %v1158 = vadd.f32 %v1156, %v1157
    %v1159 = vrot.slane %v1158, 1
    %v1160 = vadd.f32 %v1158, %v1159
    %v1161 = vadd.f32 %v1145, %v1147
    %v1162 = vadd.f32 %v1161, %v1149
    %v1163 = vadd.f32 %v1162, %v1151
    %v1164 = vrot.slane %v1163, 4
    %v1165 = vadd.f32 %v1163, %v1164
    %v1166 = vrot.slane %v1165, 2
    %v1167 = vadd.f32 %v1165, %v1166
    %v1168 = vrot.slane %v1167, 1
    %v1169 = vadd.f32 %v1167, %v1168
    %v1170 = vmul.f32 %v1160, 0.03125
    %v1171 = vmul.f32 %v1169, 0.03125
    %v1172 = vmul.f32 %v1142, %v1142
    %v1173 = vmul.f32 %v1143, %v1143
    %v1174 = vsub.f32 %v1170, %v1172
    %v1175 = vsub.f32 %v1171, %v1173
    %v1176 = vmax.f32 %v1174, 0.0
    %v1177 = vmax.f32 %v1175, 0.0
    %v1178 = vadd.f32 %v1176, 1e-05
    %v1179 = vadd.f32 %v1177, 1e-05
    %v1180 = vrsqrt.pop %v1178
    %v1181 = vmul.f32 %v1180, %v1178
    %v1182 = vmul.f32 %v1181, %v1180
    %v1183 = vmul.f32 0.5, %v1182
    %v1184 = vsub.f32 1.5, %v1183
    %v1185 = vmul.f32 %v1180, %v1184
    %vm1186 = vweird.f32 %v1178
    %vm1187 = vweird.f32 %v1180
    %vm1188 = vmor %vm1186, %vm1187
    %v1189 = vsel %vm1188, %v1180, %v1185
    %v1190 = vrsqrt.pop %v1179
    %v1191 = vmul.f32 %v1190, %v1179
    %v1192 = vmul.f32 %v1191, %v1190
    %v1193 = vmul.f32 0.5, %v1192
    %v1194 = vsub.f32 1.5, %v1193
    %v1195 = vmul.f32 %v1190, %v1194
    %vm1196 = vweird.f32 %v1179
    %vm1197 = vweird.f32 %v1190
    %vm1198 = vmor %vm1196, %vm1197
    %v1199 = vsel %vm1198, %v1190, %v1195
    %v1200 = vsub.f32 %v1106, %v1142
    %v1201 = vsub.f32 %v1107, %v1143
    %v1202 = vsub.f32 %v1108, %v1142
    %v1203 = vsub.f32 %v1109, %v1143
    %v1204 = vsub.f32 %v1110, %v1142
    %v1205 = vsub.f32 %v1111, %v1143
    %v1206 = vsub.f32 %v1112, %v1142
    %v1207 = vsub.f32 %v1113, %v1143
    %v1208 = vmul.f32 %v1200, %v1189
    %v1209 = vmul.f32 %v1201, %v1199
    %v1210 = vmul.f32 %v1202, %v1189
    %v1211 = vmul.f32 %v1203, %v1199
    %v1212 = vmul.f32 %v1204, %v1189
    %v1213 = vmul.f32 %v1205, %v1199
    %v1214 = vmul.f32 %v1206, %v1189
    %v1215 = vmul.f32 %v1207, %v1199
    %1217 = vset.pattern.permute.xlu0 0
    %1218 = vperm.xlu0 %1217, %v1115
    %v1219 = vpop.permute.xlu0 %1218
    %1222 = vset.pattern.permute.xlu0 0
    %1223 = vperm.xlu0 %1222, %v1116
    %v1224 = vpop.permute.xlu0 %1223
    %1227 = vset.pattern.permute.xlu0 0
    %1228 = vperm.xlu0 %1227, %v1117
    %v1229 = vpop.permute.xlu0 %1228
    %1232 = vset.pattern.permute.xlu0 0
    %1233 = vperm.xlu0 %1232, %v1118
    %v1234 = vpop.permute.xlu0 %1233
    %v1236 = vmul.f32 %v1208, %v1219
    %v1237 = vmul.f32 %v1209, %v1219
    %v1238 = vmul.f32 %v1210, %v1224
    %v1239 = vmul.f32 %v1211, %v1224
    %v1240 = vmul.f32 %v1212, %v1229
    %v1241 = vmul.f32 %v1213, %v1229
    %v1242 = vmul.f32 %v1214, %v1234
    %v1243 = vmul.f32 %v1215, %v1234
    %1245 = vset.pattern.permute.xlu0 0
    %1246 = vperm.xlu0 %1245, %v1120
    %v1247 = vpop.permute.xlu0 %1246
    %1250 = vset.pattern.permute.xlu0 0
    %1251 = vperm.xlu0 %1250, %v1121
    %v1252 = vpop.permute.xlu0 %1251
    %1255 = vset.pattern.permute.xlu0 0
    %1256 = vperm.xlu0 %1255, %v1122
    %v1257 = vpop.permute.xlu0 %1256
    %1260 = vset.pattern.permute.xlu0 0
    %1261 = vperm.xlu0 %1260, %v1123
    %v1262 = vpop.permute.xlu0 %1261
    %v1264 = vadd.f32 %v1236, %v1247
    %v1265 = vadd.f32 %v1237, %v1247
    %v1266 = vadd.f32 %v1238, %v1252
    %v1267 = vadd.f32 %v1239, %v1252
    %v1268 = vadd.f32 %v1240, %v1257
    %v1269 = vadd.f32 %v1241, %v1257
    %v1270 = vadd.f32 %v1242, %v1262
    %v1271 = vadd.f32 %v1243, %v1262
    %s1272 = scalar_lea.vmem %s4, 384
    %v1273 = vld [vmem:[%s1272] sm:$0xff]
    %v1274 = vld [vmem:[%s1272 + $0x8] sm:$0xff]
    %s1275 = scalar_lea.vmem %s4, 416
    %v1276 = vld [vmem:[%s1275] sm:$0xff]
    %v1277 = vld [vmem:[%s1275 + $0x8] sm:$0xff]
    %v1278 = vld [vmem:[%s3] sm:$0xff]
    %v1279 = vld [vmem:[%s3 + $0x8] sm:$0xff]
    %1281 = vset.pattern.permute.xlu0 0
    %1282 = vperm.xlu0 %1281, %v1273
    %v1283 = vpop.permute.xlu0 %1282
    %1286 = vset.pattern.permute.xlu0 0
    %1287 = vperm.xlu0 %1286, %v1274
    %v1288 = vpop.permute.xlu0 %1287
    %v1291 = vsel %vm455, %v1278, 0
    %v1294 = vsel %vm455, %v1279, 0
    %1296 = vmatpush.msra.mxu0 0.0
    %1297 = vmatpush.msra.mxu0 0.0
    %1298 = vmatpush.msra.mxu0 0.0
    %1299 = vmatpush.msra.mxu0 0.0
    %1300 = vmatpush.msra.mxu0 0.0
    %1301 = vmatpush.msra.mxu0 0.0
    %1302 = vmatpush.msra.mxu0 0.0
    %1303 = vmatpush.msra.mxu0 0.0
    %1304 = vmatpush.msra.mxu0 0.0
    %1305 = vmatpush.msra.mxu0 0.0
    %1306 = vmatpush.msra.mxu0 0.0
    %1307 = vmatpush.msra.mxu0 0.0
    %1308 = vmatpush.msra.mxu0 %v1270
    %1309 = vmatpush.msra.mxu0 %v1268
    %1310 = vmatpush.msra.mxu0 %v1266
    %1311 = vmatpush.msra.mxu0 %v1264
    %1312 = vmatmul.f32.gmra.mxu0 %v1291
    %v1313 = vpop.f32.mrf.mxu0
    %v1314 = vadd.f32 %v1283, %v1313
    %1315 = vmatmul.f32.gmra.mxu0 %v1294
    %v1316 = vpop.f32.mrf.mxu0
    %v1317 = vadd.f32 %v1288, %v1316
    %1318 = vdwg.mxu0
    %1319 = vmatpush.msra.mxu0 0.0
    %1320 = vmatpush.msra.mxu0 0.0
    %1321 = vmatpush.msra.mxu0 0.0
    %1322 = vmatpush.msra.mxu0 0.0
    %1323 = vmatpush.msra.mxu0 0.0
    %1324 = vmatpush.msra.mxu0 0.0
    %1325 = vmatpush.msra.mxu0 0.0
    %1326 = vmatpush.msra.mxu0 0.0
    %1327 = vmatpush.msra.mxu0 0.0
    %1328 = vmatpush.msra.mxu0 0.0
    %1329 = vmatpush.msra.mxu0 0.0
    %1330 = vmatpush.msra.mxu0 0.0
    %1331 = vmatpush.msra.mxu0 %v1271
    %1332 = vmatpush.msra.mxu0 %v1269
    %1333 = vmatpush.msra.mxu0 %v1267
    %1334 = vmatpush.msra.mxu0 %v1265
    %1335 = vmatmul.f32.gmra.mxu0 %v1291
    %v1336 = vpop.f32.mrf.mxu0
    %v1337 = vadd.f32 %v1283, %v1336
    %1338 = vmatmul.f32.gmra.mxu0 %v1294
    %v1339 = vpop.f32.mrf.mxu0
    %v1340 = vadd.f32 %v1288, %v1339
    %1341 = vdwg.mxu0
    %v1342 = vmul.f32 %v1314, 0.01
    %v1343 = vmul.f32 %v1337, 0.01
    %v1344 = vmul.f32 %v1317, 0.01
    %v1345 = vmul.f32 %v1340, 0.01
    %v1346 = vmax.f32 %v1314, %v1342
    %v1347 = vmax.f32 %v1337, %v1343
    %v1348 = vmax.f32 %v1317, %v1344
    %v1349 = vmax.f32 %v1340, %v1345
    %1351 = vset.pattern.permute.xlu0 0
    %1352 = vperm.xlu0 %1351, %v1276
    %v1353 = vpop.permute.xlu0 %1352
    %1356 = vset.pattern.permute.xlu0 0
    %1357 = vperm.xlu0 %1356, %v1277
    %v1358 = vpop.permute.xlu0 %1357
    %v1360 = vmul.f32 %v1346, %v1353
    %v1361 = vmul.f32 %v1347, %v1353
    %v1362 = vmul.f32 %v1348, %v1358
    %v1363 = vmul.f32 %v1349, %v1358
    %v1364 = vadd.f32 %v1360, %v1362
    %v1365 = vrot.slane %v1364, 4
    %v1366 = vadd.f32 %v1364, %v1365
    %v1367 = vrot.slane %v1366, 2
    %v1368 = vadd.f32 %v1366, %v1367
    %v1369 = vrot.slane %v1368, 1
    %v1370 = vadd.f32 %v1368, %v1369
    %v1371 = vadd.f32 %v1361, %v1363
    %v1372 = vrot.slane %v1371, 4
    %v1373 = vadd.f32 %v1371, %v1372
    %v1374 = vrot.slane %v1373, 2
    %v1375 = vadd.f32 %v1373, %v1374
    %v1376 = vrot.slane %v1375, 1
    %v1377 = vadd.f32 %v1375, %v1376
    %s1378 = sld [smem:[#allocation2]]
    %v1379 = vstv %s1378
    %v1380 = vadd.f32 %v1370, %v1379
    %v1381 = vadd.f32 %v1377, %v1379
    %v1382 = vand.u32 2147483647, %v1380
    %v1383 = vand.u32 2147483647, %v1381
    %v1384 = vsub.f32 0.0, %v1382
    %v1385 = vsub.f32 0.0, %v1383
    %v1386 = vmul.f32 %v1384, 1.442695
    %v1387 = vpow.pop %v1386
    %v1388 = vmul.f32 %v1385, 1.442695
    %v1389 = vpow.pop %v1388
    %v1390 = vadd.f32 %v1387, 1.0
    %v1391 = vadd.f32 %v1389, 1.0
    %v1392 = vrcp.pop %v1390
    %v1393 = vmul.f32 %v1390, %v1392
    %v1394 = vsub.f32 1.0, %v1393
    %v1395 = vmul.f32 %v1392, %v1394
    %v1396 = vadd.f32 %v1392, %v1395
    %vm1397 = vweird.f32 %v1390
    %vm1398 = vweird.f32 %v1392
    %vm1399 = vmor %vm1397, %vm1398
    %v1400 = vsel %vm1399, %v1392, %v1396
    %v1401 = vand.u32 2147483647, %v1390
    %vm1402 = vcmp.eq.f32.partialorder %v1401, 8.507059e+37
    %v1403 = vand.u32 %v1390, 2147483648
    %v1404 = vor.u32 1.1754944e-38, %v1403
    %v1405 = vsel %vm1402, %v1404, %v1400
    %v1406 = vrcp.pop %v1391
    %v1407 = vmul.f32 %v1391, %v1406
    %v1408 = vsub.f32 1.0, %v1407
    %v1409 = vmul.f32 %v1406, %v1408
    %v1410 = vadd.f32 %v1406, %v1409
    %vm1411 = vweird.f32 %v1391
    %vm1412 = vweird.f32 %v1406
    %vm1413 = vmor %vm1411, %vm1412
    %v1414 = vsel %vm1413, %v1406, %v1410
    %v1415 = vand.u32 2147483647, %v1391
    %vm1416 = vcmp.eq.f32.partialorder %v1415, 8.507059e+37
    %v1417 = vand.u32 %v1391, 2147483648
    %v1418 = vor.u32 1.1754944e-38, %v1417
    %v1419 = vsel %vm1416, %v1418, %v1414
    %vm1420 = vcmp.ge.f32.partialorder %v1380, 0.0
    %vm1421 = vcmp.ge.f32.partialorder %v1381, 0.0
    %v1422 = vmul.f32 %v1387, %v1405
    %v1423 = vmul.f32 %v1389, %v1419
    %v1424 = vsel %vm1420, %v1405, %v1422
    %v1425 = vsel %vm1421, %v1419, %v1423
    %v1428 = vrot.slane %v1425, 7
    %vm1429 = vcmask 1040384
    %v1430 = vsel %vm1429, %v1424, %v1428
    %v1432 = vlaneseq
    %vm1433 = vcmp.ge.s32.totalorder %v1432, 0
    %vm1434 = vcmp.lt.s32.totalorder %v1432, 256
    %vm1435 = vmand %vm1433, %vm1434
    %1436 = vst.msk [vmem:[#allocation3] sm:$0x3] %vm1435, %v1430
    // Predicated region
    $region26: #{tpu_custom_call.1} parent=1 // pred_check
      _
    $region27: #{tpu_custom_call.1} parent=1 // pred_check_branch
      %1438 = sbr.rel (0) target = $region29
    $region28: #{tpu_custom_call.1} parent=1 // pred_region
      %1440 = vsyncadd [#allocation4], 0
      %s1442 = sshll.u32 [#allocation3], 4
      %s1443 = int_to_ptr.vmem [resolvable:$true] %s1442
      %s1444 = sshll.u32 %s6, 4
      %s1445 = int_to_ptr.hbm [resolvable:$true] %s1444
      %1447 = dma.vmem_to_hbm [thread:$0]  %s1443, 32, %s1445, [#allocation4]
    $region29: #{tpu_custom_call.1} parent=1 // pred_fallthru
      _
    // Predicated region
    $region30: #{tpu_custom_call.1} parent=1 // pred_check
      _
    $region31: #{tpu_custom_call.1} parent=1 // pred_check_branch
      %1449 = sbr.rel (0) target = $region33
    $region32: #{tpu_custom_call.1} parent=1 // pred_region
      %1451 = dma.done [#allocation4], 32
    $region33: #{tpu_custom_call.1} parent=1 // pred_fallthru
      _
    %1452 = vsyncpa [#allocation4], 1

</llo_original>
